<compile_context>
chip_gen: v5e
topology: v5e:2x2
jax: 0.10.0
libtpu: 0.0.40
codegen_flags: <defaults>
</compile_context>

<pallas_src>
import functools

import jax
import jax.numpy as jnp
from jax import lax
from jax.experimental import pallas as pl
from jax.experimental.pallas import tpu as pltpu

_LN_EPS = 1e-5
_SQRT_2_OVER_PI = 0.7978845608028654
_CONTRACT_LAST = (((1,), (1,)), ((), ()))   # contract last axis of both operands


def _layernorm_f32(x, gamma, beta, eps):
    """LayerNorm over the last dim; statistics in f32 (torch semantics, biased var)."""
    xf = x.astype(jnp.float32)
    mu = jnp.mean(xf, axis=-1, keepdims=True)
    var = jnp.mean((xf - mu) ** 2, axis=-1, keepdims=True)
    return (xf - mu) * lax.rsqrt(var + eps) * gamma.astype(jnp.float32) + beta.astype(jnp.float32)


def _gelu_tanh(h):
    # TODO(synk): torch nn.GELU() defaults to the exact erf form; using the tanh
    # approximation (<=1e-3 abs diff) for guaranteed Mosaic lowering.
    return 0.5 * h * (1.0 + jnp.tanh(_SQRT_2_OVER_PI * (h + 0.044715 * h * h * h)))


# --------------------------------------------------------------------------------------
# One fused transformer layer:
#   x = x + to_out( softmax(LN(x) Wq (LN(x) Wk)^T / sqrt(d)) . (LN(x) Wv) )
#   x = x + W2 GELU(W1 LN(x) + b1) + b2
# --------------------------------------------------------------------------------------
def _layer_kernel(x_ref, ag_ref, ab_ref, wqkv_ref, wout_t_ref,
                  fg_ref, fb_ref, w1_ref, b1_ref, w2_ref, b2_ref,
                  o_ref, attnv_ref,
                  *, heads, dim_head, eps, scale):
    inner = heads * dim_head
    cdtype = wqkv_ref.dtype            # MXU compute dtype (no forced f32 upcast)

    x = x_ref[0]                       # (N, D) full token sequence for this batch item

    # ------------------------------ Attention ------------------------------
    xn = _layernorm_f32(x, ag_ref[...], ab_ref[...], eps).astype(cdtype)        # (N, D)

    # All-heads QKV in one wide, lane-dense matmul: (N, D) x (3*inner, D)^T -> (N, 3*inner)
    qkv = lax.dot_general(xn, wqkv_ref[...], _CONTRACT_LAST,
                          preferred_element_type=jnp.float32)
    q = (qkv[:, :inner] * scale).astype(cdtype)      # fold softmax scale into q
    k = qkv[:, inner:2 * inner].astype(cdtype)
    v = qkv[:, 2 * inner:3 * inner].astype(cdtype)

    # Per-head softmax(q k^T) v — statically unrolled; each head's result lands at a
    # static column offset of the (N, inner) VMEM scratch so the output projection
    # below is a single inner-deep (fully-filled) MXU contraction.
    for h in range(heads):
        lo = h * dim_head
        qh = q[:, lo:lo + dim_head]                  # (N, dh)
        kh = k[:, lo:lo + dim_head]                  # (N, dh)
        vh = v[:, lo:lo + dim_head]                  # (N, dh)
        # q @ k^T without materializing a transpose (contract the dim_head axes).
        dots = lax.dot_general(qh, kh, _CONTRACT_LAST,
                               preferred_element_type=jnp.float32)              # (N, N)
        m = jnp.max(dots, axis=-1, keepdims=True)
        p = jnp.exp(dots - m)
        attn = p * pl.reciprocal(jnp.sum(p, axis=-1, keepdims=True), approx=True)
        out_h = jnp.dot(attn.astype(cdtype), vh,
                        preferred_element_type=jnp.float32)                     # (N, dh)
        attnv_ref[:, lo:lo + dim_head] = out_h.astype(attnv_ref.dtype)

    # Single fused output projection (inner-deep) + residual.
    attn_out = jnp.dot(attnv_ref[...], wout_t_ref[...],
                       preferred_element_type=jnp.float32)                      # (N, D)
    x1 = x.astype(jnp.float32) + attn_out            # residual stream in f32

    # ------------------------------ FeedForward ------------------------------
    xn2 = _layernorm_f32(x1, fg_ref[...], fb_ref[...], eps).astype(cdtype)
    hdn = lax.dot_general(xn2, w1_ref[...], _CONTRACT_LAST,
                          preferred_element_type=jnp.float32)                   # (N, H)
    hdn = hdn + b1_ref[...].astype(jnp.float32)
    g = _gelu_tanh(hdn)
    y = lax.dot_general(g.astype(cdtype), w2_ref[...], _CONTRACT_LAST,
                        preferred_element_type=jnp.float32)                     # (N, D)
    y = y + b2_ref[...].astype(jnp.float32)

    o_ref[0] = (x1 + y).astype(o_ref.dtype)


# --------------------------------------------------------------------------------------
# Final LayerNorm
# --------------------------------------------------------------------------------------
def _layernorm_kernel(x_ref, gamma_ref, beta_ref, o_ref, *, eps):
    o_ref[0] = _layernorm_f32(x_ref[0], gamma_ref[...], beta_ref[...], eps).astype(o_ref.dtype)


# --------------------------------------------------------------------------------------
# Wrappers
# --------------------------------------------------------------------------------------
def _token_tile(n, target=512):
    """Largest 128- (else 8-) aligned token tile <= target dividing n, else full n."""
    if n <= target:
        return n
    for step in (128, 8):
        t = target - (target % step)
        while t >= step:
            if n % t == 0:
                return t
            t -= step
    return n


def transformer_layer(x, layer, *, heads, dim_head, eps=_LN_EPS):
    """x: (B, N, D).  Weights in torch layouts: w_qkv (3*inner, D), w1 (H, D),
    w2 (D, H); w_out_t (inner, D) is torch (D, inner) transposed ONCE at build time."""
    B, N, D = x.shape
    inner = heads * dim_head
    H = layer["w1"].shape[0]
    kernel = functools.partial(_layer_kernel, heads=heads, dim_head=dim_head,
                               eps=eps, scale=dim_head ** -0.5)
    const2 = lambda b: (0, 0)
    return pl.pallas_call(
        kernel,
        out_shape=jax.ShapeDtypeStruct((B, N, D), x.dtype),
        grid_spec=pltpu.PrefetchScalarGridSpec(
            num_scalar_prefetch=0,
            grid=(B,),
            in_specs=[
                pl.BlockSpec((1, N, D), lambda b: (b, 0, 0)),     # x (full sequence resident)
                pl.BlockSpec((1, D), const2),                     # attn LN gamma
                pl.BlockSpec((1, D), const2),                     # attn LN beta
                pl.BlockSpec((3 * inner, D), const2),             # W_qkv (torch layout)
                pl.BlockSpec((inner, D), const2),                 # W_out^T (pre-transposed)
                pl.BlockSpec((1, D), const2),                     # ff LN gamma
                pl.BlockSpec((1, D), const2),                     # ff LN beta
                pl.BlockSpec((H, D), const2),                     # W1 (torch layout)
                pl.BlockSpec((1, H), const2),                     # b1
                pl.BlockSpec((D, H), const2),                     # W2 (torch layout)
                pl.BlockSpec((1, D), const2),                     # b2
            ],
            out_specs=pl.BlockSpec((1, N, D), lambda b: (b, 0, 0)),
            scratch_shapes=[pltpu.VMEM((N, inner), x.dtype)],     # per-head attn@V buffer
        ),
        compiler_params=pltpu.CompilerParams(
            dimension_semantics=("parallel",),
            vmem_limit_bytes=32 * 1024 * 1024),
    )(x,
      layer["attn_gamma"].reshape(1, D), layer["attn_beta"].reshape(1, D),
      layer["w_qkv"], layer["w_out_t"],
      layer["ff_gamma"].reshape(1, D), layer["ff_beta"].reshape(1, D),
      layer["w1"], layer["b1"].reshape(1, H), layer["w2"], layer["b2"].reshape(1, D))


def layernorm_block(x, gamma, beta, *, eps=_LN_EPS):
    B, N, D = x.shape
    tt = _token_tile(N)
    kernel = functools.partial(_layernorm_kernel, eps=eps)
    return pl.pallas_call(
        kernel,
        out_shape=jax.ShapeDtypeStruct((B, N, D), x.dtype),
        grid_spec=pltpu.PrefetchScalarGridSpec(
            num_scalar_prefetch=0,
            grid=(B, N // tt),
            in_specs=[
                pl.BlockSpec((1, tt, D), lambda b, ti: (b, ti, 0)),
                pl.BlockSpec((1, D), lambda b, ti: (0, 0)),
                pl.BlockSpec((1, D), lambda b, ti: (0, 0)),
            ],
            out_specs=pl.BlockSpec((1, tt, D), lambda b, ti: (b, ti, 0)),
        ),
        compiler_params=pltpu.CompilerParams(
            dimension_semantics=("parallel", "parallel"),
            vmem_limit_bytes=32 * 1024 * 1024),
    )(x, gamma.reshape(1, D), beta.reshape(1, D))


def transformer_forward(x, params, *, heads, dim_head, eps=_LN_EPS):
    """Matches Transformer.forward (masked=False): depth x [attn + x, ff + x], final LN."""
    for layer in params["layers"]:
        x = transformer_layer(x, layer, heads=heads, dim_head=dim_head, eps=eps)
    return layernorm_block(x, params["final_gamma"], params["final_beta"], eps=eps)


# --------------------------------------------------------------------------------------
# Pure-JAX reference (mirrors the PyTorch forward; GELU uses the same tanh approximation)
# --------------------------------------------------------------------------------------
def transformer_ref(x, params, *, heads, dim_head, eps=_LN_EPS):
    def ln(t, g, b):
        tf = t.astype(jnp.float32)
        mu = jnp.mean(tf, -1, keepdims=True)
        var = jnp.mean((tf - mu) ** 2, -1, keepdims=True)
        return (tf - mu) / jnp.sqrt(var + eps) * g + b

    B, N, _ = x.shape
    xf = x.astype(jnp.float32)
    for layer in params["layers"]:
        xn = ln(xf, layer["attn_gamma"], layer["attn_beta"])
        qkv = xn @ layer["w_qkv"].T.astype(jnp.float32)
        q, k, v = jnp.split(qkv, 3, axis=-1)

        def split_heads(t):
            return jnp.transpose(t.reshape(B, N, heads, dim_head), (0, 2, 1, 3))

        q, k, v = map(split_heads, (q, k, v))
        dots = jnp.einsum('bhnd,bhmd->bhnm', q, k) * (dim_head ** -0.5)
        attn = jax.nn.softmax(dots, axis=-1)
        out = jnp.einsum('bhnm,bhmd->bhnd', attn, v)
        out = jnp.transpose(out, (0, 2, 1, 3)).reshape(B, N, heads * dim_head)
        xf = xf + out @ layer["w_out_t"].astype(jnp.float32)

        xn = ln(xf, layer["ff_gamma"], layer["ff_beta"])
        h = xn @ layer["w1"].T.astype(jnp.float32) + layer["b1"]
        xf = xf + _gelu_tanh(h) @ layer["w2"].T.astype(jnp.float32) + layer["b2"]
    return ln(xf, params["final_gamma"], params["final_beta"])


if __name__ == "__main__":
    B, N, DIM = 2, 8, 32
    DEPTH, HEADS, DIM_HEAD, MLP_DIM = 2, 4, 16, 64
    INNER = HEADS * DIM_HEAD

    key = jax.random.PRNGKey(0)
    key, kx = jax.random.split(key)
    x = jax.random.normal(kx, (B, N, DIM), dtype=jnp.float32)

    layers = []
    for _ in range(DEPTH):
        key, k1, k2, k3, k4, k5, k6, k7, k8, k9, k10 = jax.random.split(key, 11)
        w_out = jax.random.normal(k2, (DIM, INNER), dtype=jnp.float32) * 0.02      # torch layout
        layers.append(dict(
            attn_gamma=1.0 + 0.1 * jax.random.normal(k7, (DIM,), dtype=jnp.float32),
            attn_beta=0.1 * jax.random.normal(k8, (DIM,), dtype=jnp.float32),
            w_qkv=jax.random.normal(k1, (3 * INNER, DIM), dtype=jnp.float32) * 0.02,  # torch layout
            w_out_t=jnp.transpose(w_out),   # transposed ONCE at parameter-build time -> (inner, D)
            ff_gamma=1.0 + 0.1 * jax.random.normal(k9, (DIM,), dtype=jnp.float32),
            ff_beta=0.1 * jax.random.normal(k10, (DIM,), dtype=jnp.float32),
            w1=jax.random.normal(k3, (MLP_DIM, DIM), dtype=jnp.float32) * 0.02,       # torch layout
            b1=jax.random.normal(k4, (MLP_DIM,), dtype=jnp.float32) * 0.02,
            w2=jax.random.normal(k5, (DIM, MLP_DIM), dtype=jnp.float32) * 0.02,       # torch layout
            b2=jax.random.normal(k6, (DIM,), dtype=jnp.float32) * 0.02,
        ))
    params = dict(layers=layers,
                  final_gamma=jnp.ones((DIM,), jnp.float32),
                  final_beta=jnp.zeros((DIM,), jnp.float32))

    y = transformer_forward(x, params, heads=HEADS, dim_head=DIM_HEAD)
    y = jax.block_until_ready(y)

    y_ref = transformer_ref(x, params, heads=HEADS, dim_head=DIM_HEAD)
    assert y.shape == (B, N, DIM)
    assert bool(jnp.all(jnp.isfinite(y)))
    max_err = float(jnp.max(jnp.abs(y - y_ref)))
    assert jnp.allclose(y, y_ref, atol=1e-2, rtol=1e-2), f"mismatch vs reference, max abs err={max_err}"
    print("KERNEL_OK")
</pallas_src>

<mosaic_0001>
module attributes {stable_mosaic.version = 11 : i64} {
  func.func @_layer_kernel(%arg0: i32, %arg1: memref<1x8x32xf32, #tpu.memory_space<vmem>>, %arg2: memref<1x32xf32, #tpu.memory_space<vmem>>, %arg3: memref<1x32xf32, #tpu.memory_space<vmem>>, %arg4: memref<192x32xf32, #tpu.memory_space<vmem>>, %arg5: memref<64x32xf32, #tpu.memory_space<vmem>>, %arg6: memref<1x32xf32, #tpu.memory_space<vmem>>, %arg7: memref<1x32xf32, #tpu.memory_space<vmem>>, %arg8: memref<64x32xf32, #tpu.memory_space<vmem>>, %arg9: memref<1x64xf32, #tpu.memory_space<vmem>>, %arg10: memref<32x64xf32, #tpu.memory_space<vmem>>, %arg11: memref<1x32xf32, #tpu.memory_space<vmem>>, %arg12: memref<1x8x32xf32, #tpu.memory_space<vmem>>, %arg13: memref<8x64xf32, #tpu.memory_space<vmem>>) attributes {dimension_semantics = [#tpu.dimension_semantics<parallel>], iteration_bounds = array<i64: 2>, scalar_prefetch = 0 : i64, scratch_operands = 1 : i64, tpu.core_type = #tpu.core_type<tc>, window_params = [{transform_indices = @transform_0, window_bounds = array<i64: 1, 8, 32>}, {pipeline_mode = #tpu.pipeline_mode<synchronous>, transform_indices = @transform_1, window_bounds = array<i64: 1, 32>}, {pipeline_mode = #tpu.pipeline_mode<synchronous>, transform_indices = @transform_2, window_bounds = array<i64: 1, 32>}, {pipeline_mode = #tpu.pipeline_mode<synchronous>, transform_indices = @transform_3, window_bounds = array<i64: 192, 32>}, {pipeline_mode = #tpu.pipeline_mode<synchronous>, transform_indices = @transform_4, window_bounds = array<i64: 64, 32>}, {pipeline_mode = #tpu.pipeline_mode<synchronous>, transform_indices = @transform_5, window_bounds = array<i64: 1, 32>}, {pipeline_mode = #tpu.pipeline_mode<synchronous>, transform_indices = @transform_6, window_bounds = array<i64: 1, 32>}, {pipeline_mode = #tpu.pipeline_mode<synchronous>, transform_indices = @transform_7, window_bounds = array<i64: 64, 32>}, {pipeline_mode = #tpu.pipeline_mode<synchronous>, transform_indices = @transform_8, window_bounds = array<i64: 1, 64>}, {pipeline_mode = #tpu.pipeline_mode<synchronous>, transform_indices = @transform_9, window_bounds = array<i64: 32, 64>}, {pipeline_mode = #tpu.pipeline_mode<synchronous>, transform_indices = @transform_10, window_bounds = array<i64: 1, 32>}, {transform_indices = @transform_11, window_bounds = array<i64: 1, 8, 32>}]} {
    %c0 = arith.constant 0 : index
    %c0_0 = arith.constant 0 : index
    %c0_1 = arith.constant 0 : index
    %0 = vector.load %arg1[%c0, %c0_0, %c0_1] : memref<1x8x32xf32, #tpu.memory_space<vmem>>, vector<1x8x32xf32>
    %1 = vector.shape_cast %0 : vector<1x8x32xf32> to vector<8x32xf32>
    %c0_2 = arith.constant 0 : index
    %c0_3 = arith.constant 0 : index
    %2 = vector.load %arg2[%c0_2, %c0_3] : memref<1x32xf32, #tpu.memory_space<vmem>>, vector<1x32xf32>
    %c0_4 = arith.constant 0 : index
    %c0_5 = arith.constant 0 : index
    %3 = vector.load %arg3[%c0_4, %c0_5] : memref<1x32xf32, #tpu.memory_space<vmem>>, vector<1x32xf32>
    %cst = arith.constant dense<0.000000e+00> : vector<8xf32>
    %4 = vector.multi_reduction <add>, %1, %cst [1] : vector<8x32xf32> to vector<8xf32>
    %5 = vector.shape_cast %4 : vector<8xf32> to vector<8x1xf32>
    %cst_6 = arith.constant 3.200000e+01 : f32
    %6 = vector.broadcast %cst_6 : f32 to vector<8x1xf32>
    %7 = arith.divf %5, %6 : vector<8x1xf32>
    %8 = vector.broadcast %7 : vector<8x1xf32> to vector<8x32xf32>
    %9 = arith.subf %1, %8 : vector<8x32xf32>
    %10 = arith.mulf %9, %9 : vector<8x32xf32>
    %cst_7 = arith.constant dense<0.000000e+00> : vector<8xf32>
    %11 = vector.multi_reduction <add>, %10, %cst_7 [1] : vector<8x32xf32> to vector<8xf32>
    %12 = vector.shape_cast %11 : vector<8xf32> to vector<8x1xf32>
    %cst_8 = arith.constant 3.200000e+01 : f32
    %13 = vector.broadcast %cst_8 : f32 to vector<8x1xf32>
    %14 = arith.divf %12, %13 : vector<8x1xf32>
    %15 = vector.broadcast %7 : vector<8x1xf32> to vector<8x32xf32>
    %16 = arith.subf %1, %15 : vector<8x32xf32>
    %cst_9 = arith.constant 9.99999974E-6 : f32
    %17 = vector.broadcast %cst_9 : f32 to vector<8x1xf32>
    %18 = arith.addf %14, %17 : vector<8x1xf32>
    %19 = math.rsqrt %18 : vector<8x1xf32>
    %20 = vector.broadcast %19 : vector<8x1xf32> to vector<8x32xf32>
    %21 = arith.mulf %16, %20 : vector<8x32xf32>
    %22 = vector.broadcast %2 : vector<1x32xf32> to vector<8x32xf32>
    %23 = arith.mulf %21, %22 : vector<8x32xf32>
    %24 = vector.broadcast %3 : vector<1x32xf32> to vector<8x32xf32>
    %25 = arith.addf %23, %24 : vector<8x32xf32>
    %c0_10 = arith.constant 0 : index
    %c0_11 = arith.constant 0 : index
    %26 = vector.load %arg4[%c0_10, %c0_11] : memref<192x32xf32, #tpu.memory_space<vmem>>, vector<192x32xf32>
    %cst_12 = arith.constant dense<0.000000e+00> : vector<8x192xf32>
    %27 = tpu.matmul %25, %26, %cst_12 {dimension_numbers = #tpu.dot_dimension_numbers<[1], [1], [0], [0], [0, 0, 1, 0], [], []>} : vector<8x32xf32>, vector<192x32xf32>, vector<8x192xf32> -> vector<8x192xf32>
    %28 = vector.extract_strided_slice %27 {offsets = [0, 0], sizes = [8, 64], strides = [1, 1]} : vector<8x192xf32> to vector<8x64xf32>
    %cst_13 = arith.constant 2.500000e-01 : f32
    %29 = vector.broadcast %cst_13 : f32 to vector<8x64xf32>
    %30 = arith.mulf %28, %29 : vector<8x64xf32>
    %31 = vector.extract_strided_slice %27 {offsets = [0, 64], sizes = [8, 64], strides = [1, 1]} : vector<8x192xf32> to vector<8x64xf32>
    %32 = vector.extract_strided_slice %27 {offsets = [0, 128], sizes = [8, 64], strides = [1, 1]} : vector<8x192xf32> to vector<8x64xf32>
    %33 = vector.extract_strided_slice %30 {offsets = [0, 0], sizes = [8, 16], strides = [1, 1]} : vector<8x64xf32> to vector<8x16xf32>
    %34 = vector.extract_strided_slice %31 {offsets = [0, 0], sizes = [8, 16], strides = [1, 1]} : vector<8x64xf32> to vector<8x16xf32>
    %35 = vector.extract_strided_slice %32 {offsets = [0, 0], sizes = [8, 16], strides = [1, 1]} : vector<8x64xf32> to vector<8x16xf32>
    %cst_14 = arith.constant dense<0.000000e+00> : vector<8x8xf32>
    %36 = tpu.matmul %33, %34, %cst_14 {dimension_numbers = #tpu.dot_dimension_numbers<[1], [1], [0], [0], [0, 0, 1, 0], [], []>} : vector<8x16xf32>, vector<8x16xf32>, vector<8x8xf32> -> vector<8x8xf32>
    %cst_15 = arith.constant dense<0xFF800000> : vector<8xf32>
    %37 = vector.multi_reduction <maximumf>, %36, %cst_15 [1] : vector<8x8xf32> to vector<8xf32>
    %38 = vector.shape_cast %37 : vector<8xf32> to vector<8x1xf32>
    %39 = vector.broadcast %38 : vector<8x1xf32> to vector<8x8xf32>
    %40 = arith.subf %36, %39 : vector<8x8xf32>
    %41 = math.exp %40 : vector<8x8xf32>
    %cst_16 = arith.constant dense<0.000000e+00> : vector<8xf32>
    %42 = vector.multi_reduction <add>, %41, %cst_16 [1] : vector<8x8xf32> to vector<8xf32>
    %43 = vector.shape_cast %42 : vector<8xf32> to vector<8x1xf32>
    %44 = tpu.reciprocal %43 {approx = true} : vector<8x1xf32> -> vector<8x1xf32>
    %45 = vector.broadcast %44 : vector<8x1xf32> to vector<8x8xf32>
    %46 = arith.mulf %41, %45 : vector<8x8xf32>
    %cst_17 = arith.constant dense<0.000000e+00> : vector<8x16xf32>
    %47 = tpu.matmul %46, %35, %cst_17 {dimension_numbers = #tpu.dot_dimension_numbers<[1], [0], [0], [1], [0, 0, 1, 1], [], []>} : vector<8x8xf32>, vector<8x16xf32>, vector<8x16xf32> -> vector<8x16xf32>
    %c0_18 = arith.constant 0 : index
    %c0_19 = arith.constant 0 : index
    %48 = vector.load %arg13[%c0_18, %c0_19] : memref<8x64xf32, #tpu.memory_space<vmem>>, vector<8x16xf32>
    tpu.vector_store %arg13[%c0_18, %c0_19], %47 {strides = array<i32>} : memref<8x64xf32, #tpu.memory_space<vmem>>, vector<8x16xf32>,
    %49 = vector.extract_strided_slice %30 {offsets = [0, 16], sizes = [8, 16], strides = [1, 1]} : vector<8x64xf32> to vector<8x16xf32>
    %50 = vector.extract_strided_slice %31 {offsets = [0, 16], sizes = [8, 16], strides = [1, 1]} : vector<8x64xf32> to vector<8x16xf32>
    %51 = vector.extract_strided_slice %32 {offsets = [0, 16], sizes = [8, 16], strides = [1, 1]} : vector<8x64xf32> to vector<8x16xf32>
    %cst_20 = arith.constant dense<0.000000e+00> : vector<8x8xf32>
    %52 = tpu.matmul %49, %50, %cst_20 {dimension_numbers = #tpu.dot_dimension_numbers<[1], [1], [0], [0], [0, 0, 1, 0], [], []>} : vector<8x16xf32>, vector<8x16xf32>, vector<8x8xf32> -> vector<8x8xf32>
    %cst_21 = arith.constant dense<0xFF800000> : vector<8xf32>
    %53 = vector.multi_reduction <maximumf>, %52, %cst_21 [1] : vector<8x8xf32> to vector<8xf32>
    %54 = vector.shape_cast %53 : vector<8xf32> to vector<8x1xf32>
    %55 = vector.broadcast %54 : vector<8x1xf32> to vector<8x8xf32>
    %56 = arith.subf %52, %55 : vector<8x8xf32>
    %57 = math.exp %56 : vector<8x8xf32>
    %cst_22 = arith.constant dense<0.000000e+00> : vector<8xf32>
    %58 = vector.multi_reduction <add>, %57, %cst_22 [1] : vector<8x8xf32> to vector<8xf32>
    %59 = vector.shape_cast %58 : vector<8xf32> to vector<8x1xf32>
    %60 = tpu.reciprocal %59 {approx = true} : vector<8x1xf32> -> vector<8x1xf32>
    %61 = vector.broadcast %60 : vector<8x1xf32> to vector<8x8xf32>
    %62 = arith.mulf %57, %61 : vector<8x8xf32>
    %cst_23 = arith.constant dense<0.000000e+00> : vector<8x16xf32>
    %63 = tpu.matmul %62, %51, %cst_23 {dimension_numbers = #tpu.dot_dimension_numbers<[1], [0], [0], [1], [0, 0, 1, 1], [], []>} : vector<8x8xf32>, vector<8x16xf32>, vector<8x16xf32> -> vector<8x16xf32>
    %c0_24 = arith.constant 0 : index
    %c16 = arith.constant 16 : index
    %64 = vector.load %arg13[%c0_24, %c16] : memref<8x64xf32, #tpu.memory_space<vmem>>, vector<8x16xf32>
    tpu.vector_store %arg13[%c0_24, %c16], %63 {strides = array<i32>} : memref<8x64xf32, #tpu.memory_space<vmem>>, vector<8x16xf32>,
    %65 = vector.extract_strided_slice %30 {offsets = [0, 32], sizes = [8, 16], strides = [1, 1]} : vector<8x64xf32> to vector<8x16xf32>
    %66 = vector.extract_strided_slice %31 {offsets = [0, 32], sizes = [8, 16], strides = [1, 1]} : vector<8x64xf32> to vector<8x16xf32>
    %67 = vector.extract_strided_slice %32 {offsets = [0, 32], sizes = [8, 16], strides = [1, 1]} : vector<8x64xf32> to vector<8x16xf32>
    %cst_25 = arith.constant dense<0.000000e+00> : vector<8x8xf32>
    %68 = tpu.matmul %65, %66, %cst_25 {dimension_numbers = #tpu.dot_dimension_numbers<[1], [1], [0], [0], [0, 0, 1, 0], [], []>} : vector<8x16xf32>, vector<8x16xf32>, vector<8x8xf32> -> vector<8x8xf32>
    %cst_26 = arith.constant dense<0xFF800000> : vector<8xf32>
    %69 = vector.multi_reduction <maximumf>, %68, %cst_26 [1] : vector<8x8xf32> to vector<8xf32>
    %70 = vector.shape_cast %69 : vector<8xf32> to vector<8x1xf32>
    %71 = vector.broadcast %70 : vector<8x1xf32> to vector<8x8xf32>
    %72 = arith.subf %68, %71 : vector<8x8xf32>
    %73 = math.exp %72 : vector<8x8xf32>
    %cst_27 = arith.constant dense<0.000000e+00> : vector<8xf32>
    %74 = vector.multi_reduction <add>, %73, %cst_27 [1] : vector<8x8xf32> to vector<8xf32>
    %75 = vector.shape_cast %74 : vector<8xf32> to vector<8x1xf32>
    %76 = tpu.reciprocal %75 {approx = true} : vector<8x1xf32> -> vector<8x1xf32>
    %77 = vector.broadcast %76 : vector<8x1xf32> to vector<8x8xf32>
    %78 = arith.mulf %73, %77 : vector<8x8xf32>
    %cst_28 = arith.constant dense<0.000000e+00> : vector<8x16xf32>
    %79 = tpu.matmul %78, %67, %cst_28 {dimension_numbers = #tpu.dot_dimension_numbers<[1], [0], [0], [1], [0, 0, 1, 1], [], []>} : vector<8x8xf32>, vector<8x16xf32>, vector<8x16xf32> -> vector<8x16xf32>
    %c0_29 = arith.constant 0 : index
    %c32 = arith.constant 32 : index
    %80 = vector.load %arg13[%c0_29, %c32] : memref<8x64xf32, #tpu.memory_space<vmem>>, vector<8x16xf32>
    tpu.vector_store %arg13[%c0_29, %c32], %79 {strides = array<i32>} : memref<8x64xf32, #tpu.memory_space<vmem>>, vector<8x16xf32>,
    %81 = vector.extract_strided_slice %30 {offsets = [0, 48], sizes = [8, 16], strides = [1, 1]} : vector<8x64xf32> to vector<8x16xf32>
    %82 = vector.extract_strided_slice %31 {offsets = [0, 48], sizes = [8, 16], strides = [1, 1]} : vector<8x64xf32> to vector<8x16xf32>
    %83 = vector.extract_strided_slice %32 {offsets = [0, 48], sizes = [8, 16], strides = [1, 1]} : vector<8x64xf32> to vector<8x16xf32>
    %cst_30 = arith.constant dense<0.000000e+00> : vector<8x8xf32>
    %84 = tpu.matmul %81, %82, %cst_30 {dimension_numbers = #tpu.dot_dimension_numbers<[1], [1], [0], [0], [0, 0, 1, 0], [], []>} : vector<8x16xf32>, vector<8x16xf32>, vector<8x8xf32> -> vector<8x8xf32>
    %cst_31 = arith.constant dense<0xFF800000> : vector<8xf32>
    %85 = vector.multi_reduction <maximumf>, %84, %cst_31 [1] : vector<8x8xf32> to vector<8xf32>
    %86 = vector.shape_cast %85 : vector<8xf32> to vector<8x1xf32>
    %87 = vector.broadcast %86 : vector<8x1xf32> to vector<8x8xf32>
    %88 = arith.subf %84, %87 : vector<8x8xf32>
    %89 = math.exp %88 : vector<8x8xf32>
    %cst_32 = arith.constant dense<0.000000e+00> : vector<8xf32>
    %90 = vector.multi_reduction <add>, %89, %cst_32 [1] : vector<8x8xf32> to vector<8xf32>
    %91 = vector.shape_cast %90 : vector<8xf32> to vector<8x1xf32>
    %92 = tpu.reciprocal %91 {approx = true} : vector<8x1xf32> -> vector<8x1xf32>
    %93 = vector.broadcast %92 : vector<8x1xf32> to vector<8x8xf32>
    %94 = arith.mulf %89, %93 : vector<8x8xf32>
    %cst_33 = arith.constant dense<0.000000e+00> : vector<8x16xf32>
    %95 = tpu.matmul %94, %83, %cst_33 {dimension_numbers = #tpu.dot_dimension_numbers<[1], [0], [0], [1], [0, 0, 1, 1], [], []>} : vector<8x8xf32>, vector<8x16xf32>, vector<8x16xf32> -> vector<8x16xf32>
    %c0_34 = arith.constant 0 : index
    %c48 = arith.constant 48 : index
    %96 = vector.load %arg13[%c0_34, %c48] : memref<8x64xf32, #tpu.memory_space<vmem>>, vector<8x16xf32>
    tpu.vector_store %arg13[%c0_34, %c48], %95 {strides = array<i32>} : memref<8x64xf32, #tpu.memory_space<vmem>>, vector<8x16xf32>,
    %c0_35 = arith.constant 0 : index
    %c0_36 = arith.constant 0 : index
    %97 = vector.load %arg13[%c0_35, %c0_36] : memref<8x64xf32, #tpu.memory_space<vmem>>, vector<8x64xf32>
    %c0_37 = arith.constant 0 : index
    %c0_38 = arith.constant 0 : index
    %98 = vector.load %arg5[%c0_37, %c0_38] : memref<64x32xf32, #tpu.memory_space<vmem>>, vector<64x32xf32>
    %cst_39 = arith.constant dense<0.000000e+00> : vector<8x32xf32>
    %99 = tpu.matmul %97, %98, %cst_39 {dimension_numbers = #tpu.dot_dimension_numbers<[1], [0], [0], [1], [0, 0, 1, 1], [], []>} : vector<8x64xf32>, vector<64x32xf32>, vector<8x32xf32> -> vector<8x32xf32>
    %100 = arith.addf %1, %99 : vector<8x32xf32>
    %c0_40 = arith.constant 0 : index
    %c0_41 = arith.constant 0 : index
    %101 = vector.load %arg6[%c0_40, %c0_41] : memref<1x32xf32, #tpu.memory_space<vmem>>, vector<1x32xf32>
    %c0_42 = arith.constant 0 : index
    %c0_43 = arith.constant 0 : index
    %102 = vector.load %arg7[%c0_42, %c0_43] : memref<1x32xf32, #tpu.memory_space<vmem>>, vector<1x32xf32>
    %cst_44 = arith.constant dense<0.000000e+00> : vector<8xf32>
    %103 = vector.multi_reduction <add>, %100, %cst_44 [1] : vector<8x32xf32> to vector<8xf32>
    %104 = vector.shape_cast %103 : vector<8xf32> to vector<8x1xf32>
    %cst_45 = arith.constant 3.200000e+01 : f32
    %105 = vector.broadcast %cst_45 : f32 to vector<8x1xf32>
    %106 = arith.divf %104, %105 : vector<8x1xf32>
    %107 = vector.broadcast %106 : vector<8x1xf32> to vector<8x32xf32>
    %108 = arith.subf %100, %107 : vector<8x32xf32>
    %109 = arith.mulf %108, %108 : vector<8x32xf32>
    %cst_46 = arith.constant dense<0.000000e+00> : vector<8xf32>
    %110 = vector.multi_reduction <add>, %109, %cst_46 [1] : vector<8x32xf32> to vector<8xf32>
    %111 = vector.shape_cast %110 : vector<8xf32> to vector<8x1xf32>
    %cst_47 = arith.constant 3.200000e+01 : f32
    %112 = vector.broadcast %cst_47 : f32 to vector<8x1xf32>
    %113 = arith.divf %111, %112 : vector<8x1xf32>
    %114 = vector.broadcast %106 : vector<8x1xf32> to vector<8x32xf32>
    %115 = arith.subf %100, %114 : vector<8x32xf32>
    %cst_48 = arith.constant 9.99999974E-6 : f32
    %116 = vector.broadcast %cst_48 : f32 to vector<8x1xf32>
    %117 = arith.addf %113, %116 : vector<8x1xf32>
    %118 = math.rsqrt %117 : vector<8x1xf32>
    %119 = vector.broadcast %118 : vector<8x1xf32> to vector<8x32xf32>
    %120 = arith.mulf %115, %119 : vector<8x32xf32>
    %121 = vector.broadcast %101 : vector<1x32xf32> to vector<8x32xf32>
    %122 = arith.mulf %120, %121 : vector<8x32xf32>
    %123 = vector.broadcast %102 : vector<1x32xf32> to vector<8x32xf32>
    %124 = arith.addf %122, %123 : vector<8x32xf32>
    %c0_49 = arith.constant 0 : index
    %c0_50 = arith.constant 0 : index
    %125 = vector.load %arg8[%c0_49, %c0_50] : memref<64x32xf32, #tpu.memory_space<vmem>>, vector<64x32xf32>
    %cst_51 = arith.constant dense<0.000000e+00> : vector<8x64xf32>
    %126 = tpu.matmul %124, %125, %cst_51 {dimension_numbers = #tpu.dot_dimension_numbers<[1], [1], [0], [0], [0, 0, 1, 0], [], []>} : vector<8x32xf32>, vector<64x32xf32>, vector<8x64xf32> -> vector<8x64xf32>
    %c0_52 = arith.constant 0 : index
    %c0_53 = arith.constant 0 : index
    %127 = vector.load %arg9[%c0_52, %c0_53] : memref<1x64xf32, #tpu.memory_space<vmem>>, vector<1x64xf32>
    %128 = vector.broadcast %127 : vector<1x64xf32> to vector<8x64xf32>
    %129 = arith.addf %126, %128 : vector<8x64xf32>
    %cst_54 = arith.constant 5.000000e-01 : f32
    %130 = vector.broadcast %cst_54 : f32 to vector<8x64xf32>
    %131 = arith.mulf %130, %129 : vector<8x64xf32>
    %cst_55 = arith.constant 4.471500e-02 : f32
    %132 = vector.broadcast %cst_55 : f32 to vector<8x64xf32>
    %133 = arith.mulf %132, %129 : vector<8x64xf32>
    %134 = arith.mulf %133, %129 : vector<8x64xf32>
    %135 = arith.mulf %134, %129 : vector<8x64xf32>
    %136 = arith.addf %129, %135 : vector<8x64xf32>
    %cst_56 = arith.constant 0.797884583 : f32
    %137 = vector.broadcast %cst_56 : f32 to vector<8x64xf32>
    %138 = arith.mulf %137, %136 : vector<8x64xf32>
    %139 = math.tanh %138 : vector<8x64xf32>
    %cst_57 = arith.constant 1.000000e+00 : f32
    %140 = vector.broadcast %cst_57 : f32 to vector<8x64xf32>
    %141 = arith.addf %140, %139 : vector<8x64xf32>
    %142 = arith.mulf %131, %141 : vector<8x64xf32>
    %c0_58 = arith.constant 0 : index
    %c0_59 = arith.constant 0 : index
    %143 = vector.load %arg10[%c0_58, %c0_59] : memref<32x64xf32, #tpu.memory_space<vmem>>, vector<32x64xf32>
    %cst_60 = arith.constant dense<0.000000e+00> : vector<8x32xf32>
    %144 = tpu.matmul %142, %143, %cst_60 {dimension_numbers = #tpu.dot_dimension_numbers<[1], [1], [0], [0], [0, 0, 1, 0], [], []>} : vector<8x64xf32>, vector<32x64xf32>, vector<8x32xf32> -> vector<8x32xf32>
    %c0_61 = arith.constant 0 : index
    %c0_62 = arith.constant 0 : index
    %145 = vector.load %arg11[%c0_61, %c0_62] : memref<1x32xf32, #tpu.memory_space<vmem>>, vector<1x32xf32>
    %146 = vector.broadcast %145 : vector<1x32xf32> to vector<8x32xf32>
    %147 = arith.addf %144, %146 : vector<8x32xf32>
    %148 = arith.addf %100, %147 : vector<8x32xf32>
    %c0_63 = arith.constant 0 : index
    %c0_64 = arith.constant 0 : index
    %c0_65 = arith.constant 0 : index
    %149 = vector.load %arg12[%c0_63, %c0_64, %c0_65] : memref<1x8x32xf32, #tpu.memory_space<vmem>>, vector<1x8x32xf32>
    %150 = vector.shape_cast %149 : vector<1x8x32xf32> to vector<8x32xf32>
    %151 = vector.shape_cast %148 : vector<8x32xf32> to vector<1x8x32xf32>
    tpu.vector_store %arg12[%c0_63, %c0_64, %c0_65], %151 {strides = array<i32>} : memref<1x8x32xf32, #tpu.memory_space<vmem>>, vector<1x8x32xf32>,
    return
  }
  func.func @transform_0(%arg0: i32) -> (i32, i32, i32) {
    %c0_i32 = arith.constant 0 : i32
    %c0_i32_0 = arith.constant 0 : i32
    %c0_i32_1 = arith.constant 0 : i32
    return %arg0, %c0_i32, %c0_i32_0 : i32, i32, i32
  }
  func.func @transform_1(%arg0: i32) -> (i32, i32) {
    %c0_i32 = arith.constant 0 : i32
    %c0_i32_0 = arith.constant 0 : i32
    %c0_i32_1 = arith.constant 0 : i32
    return %c0_i32, %c0_i32_0 : i32, i32
  }
  func.func @transform_2(%arg0: i32) -> (i32, i32) {
    %c0_i32 = arith.constant 0 : i32
    %c0_i32_0 = arith.constant 0 : i32
    %c0_i32_1 = arith.constant 0 : i32
    return %c0_i32, %c0_i32_0 : i32, i32
  }
  func.func @transform_3(%arg0: i32) -> (i32, i32) {
    %c0_i32 = arith.constant 0 : i32
    %c0_i32_0 = arith.constant 0 : i32
    %c0_i32_1 = arith.constant 0 : i32
    return %c0_i32, %c0_i32_0 : i32, i32
  }
  func.func @transform_4(%arg0: i32) -> (i32, i32) {
    %c0_i32 = arith.constant 0 : i32
    %c0_i32_0 = arith.constant 0 : i32
    %c0_i32_1 = arith.constant 0 : i32
    return %c0_i32, %c0_i32_0 : i32, i32
  }
  func.func @transform_5(%arg0: i32) -> (i32, i32) {
    %c0_i32 = arith.constant 0 : i32
    %c0_i32_0 = arith.constant 0 : i32
    %c0_i32_1 = arith.constant 0 : i32
    return %c0_i32, %c0_i32_0 : i32, i32
  }
  func.func @transform_6(%arg0: i32) -> (i32, i32) {
    %c0_i32 = arith.constant 0 : i32
    %c0_i32_0 = arith.constant 0 : i32
    %c0_i32_1 = arith.constant 0 : i32
    return %c0_i32, %c0_i32_0 : i32, i32
  }
  func.func @transform_7(%arg0: i32) -> (i32, i32) {
    %c0_i32 = arith.constant 0 : i32
    %c0_i32_0 = arith.constant 0 : i32
    %c0_i32_1 = arith.constant 0 : i32
    return %c0_i32, %c0_i32_0 : i32, i32
  }
  func.func @transform_8(%arg0: i32) -> (i32, i32) {
    %c0_i32 = arith.constant 0 : i32
    %c0_i32_0 = arith.constant 0 : i32
    %c0_i32_1 = arith.constant 0 : i32
    return %c0_i32, %c0_i32_0 : i32, i32
  }
  func.func @transform_9(%arg0: i32) -> (i32, i32) {
    %c0_i32 = arith.constant 0 : i32
    %c0_i32_0 = arith.constant 0 : i32
    %c0_i32_1 = arith.constant 0 : i32
    return %c0_i32, %c0_i32_0 : i32, i32
  }
  func.func @transform_10(%arg0: i32) -> (i32, i32) {
    %c0_i32 = arith.constant 0 : i32
    %c0_i32_0 = arith.constant 0 : i32
    %c0_i32_1 = arith.constant 0 : i32
    return %c0_i32, %c0_i32_0 : i32, i32
  }
  func.func @transform_11(%arg0: i32) -> (i32, i32, i32) {
    %c0_i32 = arith.constant 0 : i32
    %c0_i32_0 = arith.constant 0 : i32
    %c0_i32_1 = arith.constant 0 : i32
    return %arg0, %c0_i32, %c0_i32_0 : i32, i32, i32
  }
}

</mosaic_0001>

<llo_original>
// kernel: tpu_custom_call.1
$region0: #{tpu_custom_call.1}
  #allocation0 [shape = 'u32[]', space=smem, size = 0x4, offset = 0x4, fixed_abs, tag = 'smem constant byte address 0x4 - core index']
  #allocation1 [shape = 'u32[72,128]{1,0:T(1,128)}', space=vmem, size = 0x9000, scoped, tag = 'internal scratch']
  #allocation2 [shape = 'f32[8,64]{1,0:T(8,128)}', space=vmem, size = 0x1000, scoped, tag = 'scratch operand']
  %s0 = inlined_call_operand.vmem [shape: f32[2,8,32], index: 0, kind: input, shape index: {}]
  %s1 = inlined_call_operand.vmem [shape: f32[1,32], index: 1, kind: input, shape index: {}]
  %s2 = inlined_call_operand.vmem [shape: f32[1,32], index: 2, kind: input, shape index: {}]
  %s3 = inlined_call_operand.vmem [shape: f32[192,32], index: 3, kind: input, shape index: {}]
  %s4 = inlined_call_operand.vmem [shape: f32[64,32], index: 4, kind: input, shape index: {}]
  %s5 = inlined_call_operand.vmem [shape: f32[1,32], index: 5, kind: input, shape index: {}]
  %s6 = inlined_call_operand.vmem [shape: f32[1,32], index: 6, kind: input, shape index: {}]
  %s7 = inlined_call_operand.vmem [shape: f32[64,32], index: 7, kind: input, shape index: {}]
  %s8 = inlined_call_operand.vmem [shape: f32[1,64], index: 8, kind: input, shape index: {}]
  %s9 = inlined_call_operand.vmem [shape: f32[32,64], index: 9, kind: input, shape index: {}]
  %s10 = inlined_call_operand.vmem [shape: f32[1,32], index: 10, kind: input, shape index: {}]
  %s11 = inlined_call_operand.hbm [shape: f32[2,8,32], index: 11, kind: output, shape index: {}]
  %s12 = sld [smem:[#allocation0]]
  $region77: #{tpu_custom_call.1} parent=0
    _
  %s14 = ssub.s32 1, %s12
  %s15 = scalar_select 0, %s14, %s12
  $region1: #{tpu_custom_call.1} parent=0
    #allocation3 [shape = 'u8[8192]{0}', space=vmem, size = 0x2000, scoped, tag = 'output window, operand 0']
    #allocation4 [shape = 's32[2]{0}', space=sflag, size = 0x8, scoped, tag = 'scoped memory for tpu_custom_call.1']
    %16 = vsyncpa [#allocation4], 0
    %s17 = scalar_lea.sflag [#allocation4], 1
    %18 = vsyncpa %s17, 0
    loop: start=0, step=1, limit=4
    $region2: #{tpu_custom_call.1} parent=1 // loop_pre_header
      _
    $region3: #{tpu_custom_call.1} parent=1 // loop_header
      %s20 = sphi 0, %s24
      %p21 = scmp.ge.s32.totalorder %s20, 4
      %s30 = sphi 0, %s32
      %s33 = sphi 0, %s30
      %s34 = sphi 0, %s33
      %s50 = sphi 0, %s34
      %s54 = sphi 0, %s54
      %s56 = sphi 0, %s54
      %s57 = sphi 0, %s56
      %s71 = sphi 0, %s57
      %s75 = sphi 0, %s75
      %s77 = sphi 0, %s75
      %s78 = sphi 0, %s77
      %s92 = sphi 0, %s78
      %s96 = sphi 0, %s96
      %s98 = sphi 0, %s96
      %s99 = sphi 0, %s98
      %s113 = sphi 0, %s99
      %s117 = sphi 0, %s117
      %s119 = sphi 0, %s117
      %s120 = sphi 0, %s119
      %s134 = sphi 0, %s120
      %s138 = sphi 0, %s138
      %s140 = sphi 0, %s138
      %s141 = sphi 0, %s140
      %s155 = sphi 0, %s141
      %s159 = sphi 0, %s159
      %s161 = sphi 0, %s159
      %s162 = sphi 0, %s161
      %s176 = sphi 0, %s162
      %s180 = sphi 0, %s180
      %s182 = sphi 0, %s180
      %s183 = sphi 0, %s182
      %s197 = sphi 0, %s183
      %s201 = sphi 0, %s201
      %s203 = sphi 0, %s201
      %s204 = sphi 0, %s203
      %s218 = sphi 0, %s204
      %s222 = sphi 0, %s222
      %s224 = sphi 0, %s222
      %s225 = sphi 0, %s224
      %s239 = sphi 0, %s225
      %s243 = sphi 0, %s243
      %s245 = sphi 0, %s243
      %s246 = sphi 0, %s245
      %s260 = sphi 0, %s246
      %s266 = sphi 0, %s268
      %s269 = sphi 0, %s266
      %s270 = sphi 0, %s269
      %s286 = sphi 0, %s270
    $region4: #{tpu_custom_call.1} parent=1 // loop_header_branch
      %23 = sbr.rel (%p21) target = $region8
    $region5: #{tpu_custom_call.1} parent=1 // loop_body
      %s25 = ssub.s32 %s20, 1
      %s26 = ssub.s32 %s20, 2
      %s27 = sadd.s32 %s20, 1
      %s28 = ssub.s32 %s20, %s27
      %p29 = scmp.eq.s32.totalorder %s28, 0
      %s31 = sadd.s32 %s30, 1
      %s32 = scalar_select %p29, %s30, %s31
      %p35 = pneg %p29
      %p36 = scmp.eq.s32.totalorder %s20, 1
      %p37 = por %p35, %p36
      %p38 = scmp.ne.s32.totalorder %s30, %s33
      %p39 = scmp.eq.s32.totalorder %s20, 0
      %p40 = por %p38, %p39
      %p41 = scmp.ne.s32.totalorder %s30, %s33
      %p42 = scmp.eq.s32.totalorder %s25, 1
      %p43 = por %p41, %p42
      %p44 = scmp.ne.s32.totalorder %s33, %s34
      %p45 = scmp.eq.s32.totalorder %s25, 0
      %p46 = por %p44, %p45
      %p47 = scmp.ne.s32.totalorder %s33, %s34
      %p48 = scmp.eq.s32.totalorder %s26, 1
      %p49 = por %p47, %p48
      %p51 = scmp.ne.s32.totalorder %s34, %s50
      %p52 = scmp.eq.s32.totalorder %s26, 0
      %p53 = por %p51, %p52
      %s55 = sadd.s32 %s54, 1
      %p58 = scmp.eq.s32.totalorder %s20, 1
      %p59 = scmp.ne.s32.totalorder %s54, %s56
      %p60 = scmp.eq.s32.totalorder %s20, 0
      %p61 = por %p59, %p60
      %p62 = scmp.ne.s32.totalorder %s54, %s56
      %p63 = scmp.eq.s32.totalorder %s25, 1
      %p64 = por %p62, %p63
      %p65 = scmp.ne.s32.totalorder %s56, %s57
      %p66 = scmp.eq.s32.totalorder %s25, 0
      %p67 = por %p65, %p66
      %p68 = scmp.ne.s32.totalorder %s56, %s57
      %p69 = scmp.eq.s32.totalorder %s26, 1
      %p70 = por %p68, %p69
      %p72 = scmp.ne.s32.totalorder %s57, %s71
      %p73 = scmp.eq.s32.totalorder %s26, 0
      %p74 = por %p72, %p73
      %s76 = sadd.s32 %s75, 1
      %p79 = scmp.eq.s32.totalorder %s20, 1
      %p80 = scmp.ne.s32.totalorder %s75, %s77
      %p81 = scmp.eq.s32.totalorder %s20, 0
      %p82 = por %p80, %p81
      %p83 = scmp.ne.s32.totalorder %s75, %s77
      %p84 = scmp.eq.s32.totalorder %s25, 1
      %p85 = por %p83, %p84
      %p86 = scmp.ne.s32.totalorder %s77, %s78
      %p87 = scmp.eq.s32.totalorder %s25, 0
      %p88 = por %p86, %p87
      %p89 = scmp.ne.s32.totalorder %s77, %s78
      %p90 = scmp.eq.s32.totalorder %s26, 1
      %p91 = por %p89, %p90
      %p93 = scmp.ne.s32.totalorder %s78, %s92
      %p94 = scmp.eq.s32.totalorder %s26, 0
      %p95 = por %p93, %p94
      %s97 = sadd.s32 %s96, 1
      %p100 = scmp.eq.s32.totalorder %s20, 1
      %p101 = scmp.ne.s32.totalorder %s96, %s98
      %p102 = scmp.eq.s32.totalorder %s20, 0
      %p103 = por %p101, %p102
      %p104 = scmp.ne.s32.totalorder %s96, %s98
      %p105 = scmp.eq.s32.totalorder %s25, 1
      %p106 = por %p104, %p105
      %p107 = scmp.ne.s32.totalorder %s98, %s99
      %p108 = scmp.eq.s32.totalorder %s25, 0
      %p109 = por %p107, %p108
      %p110 = scmp.ne.s32.totalorder %s98, %s99
      %p111 = scmp.eq.s32.totalorder %s26, 1
      %p112 = por %p110, %p111
      %p114 = scmp.ne.s32.totalorder %s99, %s113
      %p115 = scmp.eq.s32.totalorder %s26, 0
      %p116 = por %p114, %p115
      %s118 = sadd.s32 %s117, 1
      %p121 = scmp.eq.s32.totalorder %s20, 1
      %p122 = scmp.ne.s32.totalorder %s117, %s119
      %p123 = scmp.eq.s32.totalorder %s20, 0
      %p124 = por %p122, %p123
      %p125 = scmp.ne.s32.totalorder %s117, %s119
      %p126 = scmp.eq.s32.totalorder %s25, 1
      %p127 = por %p125, %p126
      %p128 = scmp.ne.s32.totalorder %s119, %s120
      %p129 = scmp.eq.s32.totalorder %s25, 0
      %p130 = por %p128, %p129
      %p131 = scmp.ne.s32.totalorder %s119, %s120
      %p132 = scmp.eq.s32.totalorder %s26, 1
      %p133 = por %p131, %p132
      %p135 = scmp.ne.s32.totalorder %s120, %s134
      %p136 = scmp.eq.s32.totalorder %s26, 0
      %p137 = por %p135, %p136
      %s139 = sadd.s32 %s138, 1
      %p142 = scmp.eq.s32.totalorder %s20, 1
      %p143 = scmp.ne.s32.totalorder %s138, %s140
      %p144 = scmp.eq.s32.totalorder %s20, 0
      %p145 = por %p143, %p144
      %p146 = scmp.ne.s32.totalorder %s138, %s140
      %p147 = scmp.eq.s32.totalorder %s25, 1
      %p148 = por %p146, %p147
      %p149 = scmp.ne.s32.totalorder %s140, %s141
      %p150 = scmp.eq.s32.totalorder %s25, 0
      %p151 = por %p149, %p150
      %p152 = scmp.ne.s32.totalorder %s140, %s141
      %p153 = scmp.eq.s32.totalorder %s26, 1
      %p154 = por %p152, %p153
      %p156 = scmp.ne.s32.totalorder %s141, %s155
      %p157 = scmp.eq.s32.totalorder %s26, 0
      %p158 = por %p156, %p157
      %s160 = sadd.s32 %s159, 1
      %p163 = scmp.eq.s32.totalorder %s20, 1
      %p164 = scmp.ne.s32.totalorder %s159, %s161
      %p165 = scmp.eq.s32.totalorder %s20, 0
      %p166 = por %p164, %p165
      %p167 = scmp.ne.s32.totalorder %s159, %s161
      %p168 = scmp.eq.s32.totalorder %s25, 1
      %p169 = por %p167, %p168
      %p170 = scmp.ne.s32.totalorder %s161, %s162
      %p171 = scmp.eq.s32.totalorder %s25, 0
      %p172 = por %p170, %p171
      %p173 = scmp.ne.s32.totalorder %s161, %s162
      %p174 = scmp.eq.s32.totalorder %s26, 1
      %p175 = por %p173, %p174
      %p177 = scmp.ne.s32.totalorder %s162, %s176
      %p178 = scmp.eq.s32.totalorder %s26, 0
      %p179 = por %p177, %p178
      %s181 = sadd.s32 %s180, 1
      %p184 = scmp.eq.s32.totalorder %s20, 1
      %p185 = scmp.ne.s32.totalorder %s180, %s182
      %p186 = scmp.eq.s32.totalorder %s20, 0
      %p187 = por %p185, %p186
      %p188 = scmp.ne.s32.totalorder %s180, %s182
      %p189 = scmp.eq.s32.totalorder %s25, 1
      %p190 = por %p188, %p189
      %p191 = scmp.ne.s32.totalorder %s182, %s183
      %p192 = scmp.eq.s32.totalorder %s25, 0
      %p193 = por %p191, %p192
      %p194 = scmp.ne.s32.totalorder %s182, %s183
      %p195 = scmp.eq.s32.totalorder %s26, 1
      %p196 = por %p194, %p195
      %p198 = scmp.ne.s32.totalorder %s183, %s197
      %p199 = scmp.eq.s32.totalorder %s26, 0
      %p200 = por %p198, %p199
      %s202 = sadd.s32 %s201, 1
      %p205 = scmp.eq.s32.totalorder %s20, 1
      %p206 = scmp.ne.s32.totalorder %s201, %s203
      %p207 = scmp.eq.s32.totalorder %s20, 0
      %p208 = por %p206, %p207
      %p209 = scmp.ne.s32.totalorder %s201, %s203
      %p210 = scmp.eq.s32.totalorder %s25, 1
      %p211 = por %p209, %p210
      %p212 = scmp.ne.s32.totalorder %s203, %s204
      %p213 = scmp.eq.s32.totalorder %s25, 0
      %p214 = por %p212, %p213
      %p215 = scmp.ne.s32.totalorder %s203, %s204
      %p216 = scmp.eq.s32.totalorder %s26, 1
      %p217 = por %p215, %p216
      %p219 = scmp.ne.s32.totalorder %s204, %s218
      %p220 = scmp.eq.s32.totalorder %s26, 0
      %p221 = por %p219, %p220
      %s223 = sadd.s32 %s222, 1
      %p226 = scmp.eq.s32.totalorder %s20, 1
      %p227 = scmp.ne.s32.totalorder %s222, %s224
      %p228 = scmp.eq.s32.totalorder %s20, 0
      %p229 = por %p227, %p228
      %p230 = scmp.ne.s32.totalorder %s222, %s224
      %p231 = scmp.eq.s32.totalorder %s25, 1
      %p232 = por %p230, %p231
      %p233 = scmp.ne.s32.totalorder %s224, %s225
      %p234 = scmp.eq.s32.totalorder %s25, 0
      %p235 = por %p233, %p234
      %p236 = scmp.ne.s32.totalorder %s224, %s225
      %p237 = scmp.eq.s32.totalorder %s26, 1
      %p238 = por %p236, %p237
      %p240 = scmp.ne.s32.totalorder %s225, %s239
      %p241 = scmp.eq.s32.totalorder %s26, 0
      %p242 = por %p240, %p241
      %s244 = sadd.s32 %s243, 1
      %p247 = scmp.eq.s32.totalorder %s20, 1
      %p248 = scmp.ne.s32.totalorder %s243, %s245
      %p249 = scmp.eq.s32.totalorder %s20, 0
      %p250 = por %p248, %p249
      %p251 = scmp.ne.s32.totalorder %s243, %s245
      %p252 = scmp.eq.s32.totalorder %s25, 1
      %p253 = por %p251, %p252
      %p254 = scmp.ne.s32.totalorder %s245, %s246
      %p255 = scmp.eq.s32.totalorder %s25, 0
      %p256 = por %p254, %p255
      %p257 = scmp.ne.s32.totalorder %s245, %s246
      %p258 = scmp.eq.s32.totalorder %s26, 1
      %p259 = por %p257, %p258
      %p261 = scmp.ne.s32.totalorder %s246, %s260
      %p262 = scmp.eq.s32.totalorder %s26, 0
      %p263 = por %p261, %p262
      %s264 = ssub.s32 %s20, %s27
      %p265 = scmp.eq.s32.totalorder %s264, 0
      %s267 = sadd.s32 %s266, 1
      %s268 = scalar_select %p265, %s266, %s267
      %p271 = pneg %p265
      %p272 = scmp.eq.s32.totalorder %s20, 1
      %p273 = por %p271, %p272
      %p274 = scmp.ne.s32.totalorder %s266, %s269
      %p275 = scmp.eq.s32.totalorder %s20, 0
      %p276 = por %p274, %p275
      %p277 = scmp.ne.s32.totalorder %s266, %s269
      %p278 = scmp.eq.s32.totalorder %s25, 1
      %p279 = por %p277, %p278
      %p280 = scmp.ne.s32.totalorder %s269, %s270
      %p281 = scmp.eq.s32.totalorder %s25, 0
      %p282 = por %p280, %p281
      %p283 = scmp.ne.s32.totalorder %s269, %s270
      %p284 = scmp.eq.s32.totalorder %s26, 1
      %p285 = por %p283, %p284
      %p287 = scmp.ne.s32.totalorder %s270, %s286
      %p288 = scmp.eq.s32.totalorder %s26, 0
      %p289 = por %p287, %p288
      %p290 = scmp.le.s32.totalorder 1, %s20
      %p291 = scmp.lt.s32.totalorder %s20, 3
      %p292 = pnand %p290, %p291
      %p293 = pneg %p292
      // Predicated region
      $region9: #{tpu_custom_call.1} parent=5 // pred_check
        _
      $region10: #{tpu_custom_call.1} parent=5 // pred_check_branch
        %295 = sbr.rel (%p292) target = $region12
      $region11: #{tpu_custom_call.1} parent=5 // pred_region
        %s296 = ssub.s32 %s20, 1
        // Predicated region
        $region13: #{tpu_custom_call.1} parent=11 // pred_check
          %p297 = pneg %p67
        $region14: #{tpu_custom_call.1} parent=11 // pred_check_branch
          %299 = sbr.rel (%p297) target = $region16
        $region15: #{tpu_custom_call.1} parent=11 // pred_region
          _
        $region16: #{tpu_custom_call.1} parent=11 // pred_fallthru
          _
        // Predicated region
        $region17: #{tpu_custom_call.1} parent=11 // pred_check
          %p300 = pneg %p88
        $region18: #{tpu_custom_call.1} parent=11 // pred_check_branch
          %302 = sbr.rel (%p300) target = $region20
        $region19: #{tpu_custom_call.1} parent=11 // pred_region
          _
        $region20: #{tpu_custom_call.1} parent=11 // pred_fallthru
          _
        // Predicated region
        $region21: #{tpu_custom_call.1} parent=11 // pred_check
          %p303 = pneg %p109
        $region22: #{tpu_custom_call.1} parent=11 // pred_check_branch
          %305 = sbr.rel (%p303) target = $region24
        $region23: #{tpu_custom_call.1} parent=11 // pred_region
          _
        $region24: #{tpu_custom_call.1} parent=11 // pred_fallthru
          _
        // Predicated region
        $region25: #{tpu_custom_call.1} parent=11 // pred_check
          %p306 = pneg %p130
        $region26: #{tpu_custom_call.1} parent=11 // pred_check_branch
          %308 = sbr.rel (%p306) target = $region28
        $region27: #{tpu_custom_call.1} parent=11 // pred_region
          _
        $region28: #{tpu_custom_call.1} parent=11 // pred_fallthru
          _
        // Predicated region
        $region29: #{tpu_custom_call.1} parent=11 // pred_check
          %p309 = pneg %p151
        $region30: #{tpu_custom_call.1} parent=11 // pred_check_branch
          %311 = sbr.rel (%p309) target = $region32
        $region31: #{tpu_custom_call.1} parent=11 // pred_region
          _
        $region32: #{tpu_custom_call.1} parent=11 // pred_fallthru
          _
        // Predicated region
        $region33: #{tpu_custom_call.1} parent=11 // pred_check
          %p312 = pneg %p172
        $region34: #{tpu_custom_call.1} parent=11 // pred_check_branch
          %314 = sbr.rel (%p312) target = $region36
        $region35: #{tpu_custom_call.1} parent=11 // pred_region
          _
        $region36: #{tpu_custom_call.1} parent=11 // pred_fallthru
          _
        // Predicated region
        $region37: #{tpu_custom_call.1} parent=11 // pred_check
          %p315 = pneg %p193
        $region38: #{tpu_custom_call.1} parent=11 // pred_check_branch
          %317 = sbr.rel (%p315) target = $region40
        $region39: #{tpu_custom_call.1} parent=11 // pred_region
          _
        $region40: #{tpu_custom_call.1} parent=11 // pred_fallthru
          _
        // Predicated region
        $region41: #{tpu_custom_call.1} parent=11 // pred_check
          %p318 = pneg %p214
        $region42: #{tpu_custom_call.1} parent=11 // pred_check_branch
          %320 = sbr.rel (%p318) target = $region44
        $region43: #{tpu_custom_call.1} parent=11 // pred_region
          _
        $region44: #{tpu_custom_call.1} parent=11 // pred_fallthru
          _
        // Predicated region
        $region45: #{tpu_custom_call.1} parent=11 // pred_check
          %p321 = pneg %p235
        $region46: #{tpu_custom_call.1} parent=11 // pred_check_branch
          %323 = sbr.rel (%p321) target = $region48
        $region47: #{tpu_custom_call.1} parent=11 // pred_region
          _
        $region48: #{tpu_custom_call.1} parent=11 // pred_fallthru
          _
        // Predicated region
        $region49: #{tpu_custom_call.1} parent=11 // pred_check
          %p324 = pneg %p256
        $region50: #{tpu_custom_call.1} parent=11 // pred_check_branch
          %326 = sbr.rel (%p324) target = $region52
        $region51: #{tpu_custom_call.1} parent=11 // pred_region
          _
        $region52: #{tpu_custom_call.1} parent=11 // pred_fallthru
          _
      $region12: #{tpu_custom_call.1} parent=5 // pred_fallthru
        _
      %p327 = scmp.lt.s32.totalorder %s20, 2
      // Predicated region
      $region53: #{tpu_custom_call.1} parent=5 // pred_check
        %p328 = pneg %p327
      $region54: #{tpu_custom_call.1} parent=5 // pred_check_branch
        %330 = sbr.rel (%p328) target = $region56
      $region55: #{tpu_custom_call.1} parent=5 // pred_region
        // Predicated region
        $region57: #{tpu_custom_call.1} parent=55 // pred_check
          %p331 = pneg %p40
        $region58: #{tpu_custom_call.1} parent=55 // pred_check_branch
          %333 = sbr.rel (%p331) target = $region60
        $region59: #{tpu_custom_call.1} parent=55 // pred_region
          %p334 = scmp.lt.s32.totalorder %s20, 1
          %s335 = scalar_select %p334, %s20, 1
          %s336 = smul.addr %s335, 8
          %s337 = scalar_lea.vmem %s0, %s336
        $region60: #{tpu_custom_call.1} parent=55 // pred_fallthru
          _
      $region56: #{tpu_custom_call.1} parent=5 // pred_fallthru
        _
      %p338 = scmp.le.s32.totalorder 1, %s20
      %p339 = scmp.lt.s32.totalorder %s20, 3
      %p340 = pnand %p338, %p339
      %p341 = pneg %p340
      // Predicated region
      $region61: #{tpu_custom_call.1} parent=5 // pred_check
        _
      $region62: #{tpu_custom_call.1} parent=5 // pred_check_branch
        %343 = sbr.rel (%p340) target = $region64
      $region63: #{tpu_custom_call.1} parent=5 // pred_region
        %s344 = ssub.s32 %s20, 1
        %p345 = scmp.lt.s32.totalorder %s25, 1
        %s346 = scalar_select %p345, %s25, 1
        %s347 = smul.addr %s346, 8
        %s348 = scalar_lea.vmem %s0, %s347
        %p349 = pneg %p46
        %p350 = pneg %p43
        %p351 = pneg %p67
        %p352 = pneg %p64
        %p353 = pneg %p88
        %p354 = pneg %p85
        %p355 = pneg %p109
        %p356 = pneg %p106
        %p357 = pneg %p130
        %p358 = pneg %p127
        %p359 = pneg %p151
        %p360 = pneg %p148
        %p361 = pneg %p172
        %p362 = pneg %p169
        %p363 = pneg %p193
        %p364 = pneg %p190
        %p365 = pneg %p214
        %p366 = pneg %p211
        %p367 = pneg %p235
        %p368 = pneg %p232
        %p369 = pneg %p256
        %p370 = pneg %p253
        %p371 = pneg %p282
        %p372 = pneg %p279
        %s373 = sand.u32 %s269, 1
        %s374 = scalar_lea.sflag [#allocation4], %s373
        %s375 = sand.u32 %s269, 1
        %s376 = smul.addr %s375, 8
        %s377 = scalar_lea.vmem [#allocation3], %s376
        %p378 = scmp.lt.s32.totalorder %s25, 1
        %s379 = scalar_select %p378, %s25, 1
        %s380 = smul.addr %s379, 8
        %s381 = scalar_lea.vmem %s0, %s380
        %v382 = vld [vmem:[%s381] sm:$0xff]
        %v383 = vld [vmem:[%s1] sm:$0x1]
        %v384 = vld [vmem:[%s2] sm:$0x1]
        %vm385 = vcmask 261120
        %v386 = vsel %vm385, %v382, 0.0
        %387 = vadd.xlane.f32.xlu0 %v386
        %v388 = vpop.xlane.xlu0 %387
        %v389 = vrcp.pop 32.0
        %v390 = vmul.f32 32.0, %v389
        %v391 = vsub.f32 1.0, %v390
        %v392 = vmul.f32 %v389, %v391
        %v393 = vadd.f32 %v389, %v392
        %vm394 = vweird.f32 %v389
        %v395 = vsel %vm394, %v389, %v393
        %v396 = vmul.f32 %v388, %v395
        %v397 = vsub.f32 %v382, %v396
        %v398 = vmul.f32 %v397, %v397
        %v399 = vsel %vm385, %v398, 0.0
        %400 = vadd.xlane.f32.xlu0 %v399
        %v401 = vpop.xlane.xlu0 %400
        %v402 = vmul.f32 %v401, %v395
        %v403 = vadd.f32 %v402, 1e-05
        %v404 = vrsqrt.pop %v403
        %v405 = vmul.f32 %v404, %v403
        %v406 = vmul.f32 %v405, %v404
        %v407 = vmul.f32 0.5, %v406
        %v408 = vsub.f32 1.5, %v407
        %v409 = vmul.f32 %v404, %v408
        %vm410 = vweird.f32 %v403
        %vm411 = vweird.f32 %v404
        %vm412 = vmor %vm410, %vm411
        %v413 = vsel %vm412, %v404, %v409
        %v414 = vmul.f32 %v397, %v413
        %v416 = vperm.slane %v383, 0
        %v418 = vmul.f32 %v414, %v416
        %v420 = vperm.slane %v384, 0
        %v422 = vadd.f32 %v418, %v420
        %v423 = vld [vmem:[%s3] sm:$0xff]
        %v424 = vld [vmem:[%s3 + $0x8] sm:$0xff]
        %v425 = vld [vmem:[%s3 + $0x10] sm:$0xff]
        %v426 = vld [vmem:[%s3 + $0x18] sm:$0xff]
        %v427 = vld [vmem:[%s3 + $0x20] sm:$0xff]
        %v428 = vld [vmem:[%s3 + $0x28] sm:$0xff]
        %v429 = vld [vmem:[%s3 + $0x30] sm:$0xff]
        %v430 = vld [vmem:[%s3 + $0x38] sm:$0xff]
        %v431 = vld [vmem:[%s3 + $0x40] sm:$0xff]
        %v432 = vld [vmem:[%s3 + $0x48] sm:$0xff]
        %v433 = vld [vmem:[%s3 + $0x50] sm:$0xff]
        %v434 = vld [vmem:[%s3 + $0x58] sm:$0xff]
        %v435 = vld [vmem:[%s3 + $0x60] sm:$0xff]
        %v436 = vld [vmem:[%s3 + $0x68] sm:$0xff]
        %v437 = vld [vmem:[%s3 + $0x70] sm:$0xff]
        %v438 = vld [vmem:[%s3 + $0x78] sm:$0xff]
        %v439 = vld [vmem:[%s3 + $0x80] sm:$0xff]
        %v440 = vld [vmem:[%s3 + $0x88] sm:$0xff]
        %v441 = vld [vmem:[%s3 + $0x90] sm:$0xff]
        %v442 = vld [vmem:[%s3 + $0x98] sm:$0xff]
        %v443 = vld [vmem:[%s3 + $0xa0] sm:$0xff]
        %v444 = vld [vmem:[%s3 + $0xa8] sm:$0xff]
        %v445 = vld [vmem:[%s3 + $0xb0] sm:$0xff]
        %v446 = vld [vmem:[%s3 + $0xb8] sm:$0xff]
        %v448 = vsel %vm385, %v422, 0
        %v451 = vsel %vm385, %v423, 0
        %v454 = vsel %vm385, %v424, 0
        %v457 = vsel %vm385, %v425, 0
        %v460 = vsel %vm385, %v426, 0
        %v463 = vsel %vm385, %v427, 0
        %v466 = vsel %vm385, %v428, 0
        %v469 = vsel %vm385, %v429, 0
        %v472 = vsel %vm385, %v430, 0
        %v475 = vsel %vm385, %v431, 0
        %v478 = vsel %vm385, %v432, 0
        %v481 = vsel %vm385, %v433, 0
        %v484 = vsel %vm385, %v434, 0
        %v487 = vsel %vm385, %v435, 0
        %v490 = vsel %vm385, %v436, 0
        %v493 = vsel %vm385, %v437, 0
        %v496 = vsel %vm385, %v438, 0
        %v499 = vsel %vm385, %v439, 0
        %v502 = vsel %vm385, %v440, 0
        %v505 = vsel %vm385, %v441, 0
        %v508 = vsel %vm385, %v442, 0
        %v511 = vsel %vm385, %v443, 0
        %v514 = vsel %vm385, %v444, 0
        %v517 = vsel %vm385, %v445, 0
        %v520 = vsel %vm385, %v446, 0
        %522 = vmatpush.xpose.msra.mxu0 %v496
        %523 = vmatpush.xpose.msra.mxu0 %v493
        %524 = vmatpush.xpose.msra.mxu0 %v490
        %525 = vmatpush.xpose.msra.mxu0 %v487
        %526 = vmatpush.xpose.msra.mxu0 %v484
        %527 = vmatpush.xpose.msra.mxu0 %v481
        %528 = vmatpush.xpose.msra.mxu0 %v478
        %529 = vmatpush.xpose.msra.mxu0 %v475
        %530 = vmatpush.xpose.msra.mxu0 %v472
        %531 = vmatpush.xpose.msra.mxu0 %v469
        %532 = vmatpush.xpose.msra.mxu0 %v466
        %533 = vmatpush.xpose.msra.mxu0 %v463
        %534 = vmatpush.xpose.msra.mxu0 %v460
        %535 = vmatpush.xpose.msra.mxu0 %v457
        %536 = vmatpush.xpose.msra.mxu0 %v454
        %537 = vmatpush.xpose.msra.mxu0 %v451
        %538 = vmatmul.f32.gmra.mxu0 %v448
        %v539 = vpop.f32.mrf.mxu0
        %v540 = vadd.f32 0.0, %v539
        %541 = vdwg.mxu0
        %542 = vmatpush.xpose.msra.mxu0 0.0
        %543 = vmatpush.xpose.msra.mxu0 0.0
        %544 = vmatpush.xpose.msra.mxu0 0.0
        %545 = vmatpush.xpose.msra.mxu0 0.0
        %546 = vmatpush.xpose.msra.mxu0 0.0
        %547 = vmatpush.xpose.msra.mxu0 0.0
        %548 = vmatpush.xpose.msra.mxu0 0.0
        %549 = vmatpush.xpose.msra.mxu0 0.0
        %550 = vmatpush.xpose.msra.mxu0 %v520
        %551 = vmatpush.xpose.msra.mxu0 %v517
        %552 = vmatpush.xpose.msra.mxu0 %v514
        %553 = vmatpush.xpose.msra.mxu0 %v511
        %554 = vmatpush.xpose.msra.mxu0 %v508
        %555 = vmatpush.xpose.msra.mxu0 %v505
        %556 = vmatpush.xpose.msra.mxu0 %v502
        %557 = vmatpush.xpose.msra.mxu0 %v499
        %558 = vmatmul.f32.gmra.mxu0 %v448
        %v559 = vpop.f32.mrf.mxu0
        %v560 = vadd.f32 0.0, %v559
        %561 = vdwg.mxu0
        %v562 = vmul.f32 %v540, 0.25
        %564 = vrot.lane.b32.xlu0 %v540, 64
        %v565 = vpop.permute.xlu0 %564
        %vm566 = vcmask 130048
        %v568 = vsel %vm566, %v562, 0
        %v570 = vsel %vm566, %v565, 0
        %572 = vmatpush.xpose.msra.mxu0 0.0
        %573 = vmatpush.xpose.msra.mxu0 0.0
        %574 = vmatpush.xpose.msra.mxu0 0.0
        %575 = vmatpush.xpose.msra.mxu0 0.0
        %576 = vmatpush.xpose.msra.mxu0 0.0
        %577 = vmatpush.xpose.msra.mxu0 0.0
        %578 = vmatpush.xpose.msra.mxu0 0.0
        %579 = vmatpush.xpose.msra.mxu0 0.0
        %580 = vmatpush.xpose.msra.mxu0 0.0
        %581 = vmatpush.xpose.msra.mxu0 0.0
        %582 = vmatpush.xpose.msra.mxu0 0.0
        %583 = vmatpush.xpose.msra.mxu0 0.0
        %584 = vmatpush.xpose.msra.mxu0 0.0
        %585 = vmatpush.xpose.msra.mxu0 0.0
        %586 = vmatpush.xpose.msra.mxu0 0.0
        %587 = vmatpush.xpose.msra.mxu0 %v570
        %588 = vmatmul.f32.gmra.mxu0 %v568
        %v589 = vpop.f32.mrf.mxu0
        %v590 = vadd.f32 0.0, %v589
        %591 = vdwg.mxu0
        %vm592 = vcmask 64512
        %v593 = vsel %vm592, %v590, -inf
        %594 = vmax.xlane.f32.xlu0 %v593
        %v595 = vpop.xlane.xlu0 %594
        %v596 = vsub.f32 %v590, %v595
        %v597 = vmul.f32 %v596, 1.442695
        %v598 = vpow.pop %v597
        %v599 = vsel %vm592, %v598, 0.0
        %600 = vadd.xlane.f32.xlu0 %v599
        %v601 = vpop.xlane.xlu0 %600
        %v602 = vrcp.pop %v601
        %v603 = vmul.f32 %v598, %v602
        %v605 = vsel %vm592, %v603, 0
        %607 = vmatpush.msra.mxu0 0.0
        %608 = vmatpush.msra.mxu0 0.0
        %609 = vmatpush.msra.mxu0 0.0
        %610 = vmatpush.msra.mxu0 0.0
        %611 = vmatpush.msra.mxu0 0.0
        %612 = vmatpush.msra.mxu0 0.0
        %613 = vmatpush.msra.mxu0 0.0
        %614 = vmatpush.msra.mxu0 0.0
        %615 = vmatpush.msra.mxu0 0.0
        %616 = vmatpush.msra.mxu0 0.0
        %617 = vmatpush.msra.mxu0 0.0
        %618 = vmatpush.msra.mxu0 0.0
        %619 = vmatpush.msra.mxu0 0.0
        %620 = vmatpush.msra.mxu0 0.0
        %621 = vmatpush.msra.mxu0 0.0
        %622 = vmatpush.msra.mxu0 %v560
        %623 = vmatmul.f32.gmra.mxu0 %v605
        %v624 = vpop.f32.mrf.mxu0
        %v625 = vadd.f32 0.0, %v624
        %626 = vdwg.mxu0
        %627 = vst.msk [vmem:[#allocation2] sm:$0xff] %vm566, %v625
        %628 = vrot.lane.b32.xlu0 %v562, 112
        %v629 = vpop.permute.xlu0 %628
        %630 = vrot.lane.b32.xlu0 %v540, 48
        %v631 = vpop.permute.xlu0 %630
        %v632 = vsel %vm566, %v629, 0
        %v634 = vsel %vm566, %v631, 0
        %636 = vmatpush.xpose.msra.mxu0 0.0
        %637 = vmatpush.xpose.msra.mxu0 0.0
        %638 = vmatpush.xpose.msra.mxu0 0.0
        %639 = vmatpush.xpose.msra.mxu0 0.0
        %640 = vmatpush.xpose.msra.mxu0 0.0
        %641 = vmatpush.xpose.msra.mxu0 0.0
        %642 = vmatpush.xpose.msra.mxu0 0.0
        %643 = vmatpush.xpose.msra.mxu0 0.0
        %644 = vmatpush.xpose.msra.mxu0 0.0
        %645 = vmatpush.xpose.msra.mxu0 0.0
        %646 = vmatpush.xpose.msra.mxu0 0.0
        %647 = vmatpush.xpose.msra.mxu0 0.0
        %648 = vmatpush.xpose.msra.mxu0 0.0
        %649 = vmatpush.xpose.msra.mxu0 0.0
        %650 = vmatpush.xpose.msra.mxu0 0.0
        %651 = vmatpush.xpose.msra.mxu0 %v634
        %652 = vmatmul.f32.gmra.mxu0 %v632
        %v653 = vpop.f32.mrf.mxu0
        %v654 = vadd.f32 0.0, %v653
        %655 = vdwg.mxu0
        %v656 = vsel %vm592, %v654, -inf
        %657 = vmax.xlane.f32.xlu0 %v656
        %v658 = vpop.xlane.xlu0 %657
        %v659 = vsub.f32 %v654, %v658
        %v660 = vmul.f32 %v659, 1.442695
        %v661 = vpow.pop %v660
        %v662 = vsel %vm592, %v661, 0.0
        %663 = vadd.xlane.f32.xlu0 %v662
        %v664 = vpop.xlane.xlu0 %663
        %v665 = vrcp.pop %v664
        %v666 = vmul.f32 %v661, %v665
        %668 = vrot.lane.b32.xlu0 %v560, 112
        %v669 = vpop.permute.xlu0 %668
        %v672 = vsel %vm592, %v666, 0
        %674 = vmatpush.msra.mxu0 0.0
        %675 = vmatpush.msra.mxu0 0.0
        %676 = vmatpush.msra.mxu0 0.0
        %677 = vmatpush.msra.mxu0 0.0
        %678 = vmatpush.msra.mxu0 0.0
        %679 = vmatpush.msra.mxu0 0.0
        %680 = vmatpush.msra.mxu0 0.0
        %681 = vmatpush.msra.mxu0 0.0
        %682 = vmatpush.msra.mxu0 0.0
        %683 = vmatpush.msra.mxu0 0.0
        %684 = vmatpush.msra.mxu0 0.0
        %685 = vmatpush.msra.mxu0 0.0
        %686 = vmatpush.msra.mxu0 0.0
        %687 = vmatpush.msra.mxu0 0.0
        %688 = vmatpush.msra.mxu0 0.0
        %689 = vmatpush.msra.mxu0 %v669
        %690 = vmatmul.f32.gmra.mxu0 %v672
        %v691 = vpop.f32.mrf.mxu0
        %v692 = vadd.f32 0.0, %v691
        %693 = vdwg.mxu0
        %695 = vrot.lane.b32.xlu0 %v692, 16
        %v696 = vpop.permute.xlu0 %695
        %vm698 = vcmask 261248
        %699 = vst.msk [vmem:[#allocation2] sm:$0xff] %vm698, %v696
        %700 = vrot.lane.b32.xlu0 %v562, 96
        %v701 = vpop.permute.xlu0 %700
        %702 = vrot.lane.b32.xlu0 %v540, 32
        %v703 = vpop.permute.xlu0 %702
        %v704 = vsel %vm566, %v701, 0
        %v706 = vsel %vm566, %v703, 0
        %708 = vmatpush.xpose.msra.mxu0 0.0
        %709 = vmatpush.xpose.msra.mxu0 0.0
        %710 = vmatpush.xpose.msra.mxu0 0.0
        %711 = vmatpush.xpose.msra.mxu0 0.0
        %712 = vmatpush.xpose.msra.mxu0 0.0
        %713 = vmatpush.xpose.msra.mxu0 0.0
        %714 = vmatpush.xpose.msra.mxu0 0.0
        %715 = vmatpush.xpose.msra.mxu0 0.0
        %716 = vmatpush.xpose.msra.mxu0 0.0
        %717 = vmatpush.xpose.msra.mxu0 0.0
        %718 = vmatpush.xpose.msra.mxu0 0.0
        %719 = vmatpush.xpose.msra.mxu0 0.0
        %720 = vmatpush.xpose.msra.mxu0 0.0
        %721 = vmatpush.xpose.msra.mxu0 0.0
        %722 = vmatpush.xpose.msra.mxu0 0.0
        %723 = vmatpush.xpose.msra.mxu0 %v706
        %724 = vmatmul.f32.gmra.mxu0 %v704
        %v725 = vpop.f32.mrf.mxu0
        %v726 = vadd.f32 0.0, %v725
        %727 = vdwg.mxu0
        %v728 = vsel %vm592, %v726, -inf
        %729 = vmax.xlane.f32.xlu0 %v728
        %v730 = vpop.xlane.xlu0 %729
        %v731 = vsub.f32 %v726, %v730
        %v732 = vmul.f32 %v731, 1.442695
        %v733 = vpow.pop %v732
        %v734 = vsel %vm592, %v733, 0.0
        %735 = vadd.xlane.f32.xlu0 %v734
        %v736 = vpop.xlane.xlu0 %735
        %v737 = vrcp.pop %v736
        %v738 = vmul.f32 %v733, %v737
        %739 = vrot.lane.b32.xlu0 %v560, 96
        %v740 = vpop.permute.xlu0 %739
        %v743 = vsel %vm592, %v738, 0
        %745 = vmatpush.msra.mxu0 0.0
        %746 = vmatpush.msra.mxu0 0.0
        %747 = vmatpush.msra.mxu0 0.0
        %748 = vmatpush.msra.mxu0 0.0
        %749 = vmatpush.msra.mxu0 0.0
        %750 = vmatpush.msra.mxu0 0.0
        %751 = vmatpush.msra.mxu0 0.0
        %752 = vmatpush.msra.mxu0 0.0
        %753 = vmatpush.msra.mxu0 0.0
        %754 = vmatpush.msra.mxu0 0.0
        %755 = vmatpush.msra.mxu0 0.0
        %756 = vmatpush.msra.mxu0 0.0
        %757 = vmatpush.msra.mxu0 0.0
        %758 = vmatpush.msra.mxu0 0.0
        %759 = vmatpush.msra.mxu0 0.0
        %760 = vmatpush.msra.mxu0 %v740
        %761 = vmatmul.f32.gmra.mxu0 %v743
        %v762 = vpop.f32.mrf.mxu0
        %v763 = vadd.f32 0.0, %v762
        %764 = vdwg.mxu0
        %766 = vrot.lane.b32.xlu0 %v763, 32
        %v767 = vpop.permute.xlu0 %766
        %vm769 = vcmask 392448
        %770 = vst.msk [vmem:[#allocation2] sm:$0xff] %vm769, %v767
        %771 = vrot.lane.b32.xlu0 %v562, 80
        %v772 = vpop.permute.xlu0 %771
        %773 = vrot.lane.b32.xlu0 %v540, 16
        %v774 = vpop.permute.xlu0 %773
        %v775 = vsel %vm566, %v772, 0
        %v777 = vsel %vm566, %v774, 0
        %779 = vmatpush.xpose.msra.mxu0 0.0
        %780 = vmatpush.xpose.msra.mxu0 0.0
        %781 = vmatpush.xpose.msra.mxu0 0.0
        %782 = vmatpush.xpose.msra.mxu0 0.0
        %783 = vmatpush.xpose.msra.mxu0 0.0
        %784 = vmatpush.xpose.msra.mxu0 0.0
        %785 = vmatpush.xpose.msra.mxu0 0.0
        %786 = vmatpush.xpose.msra.mxu0 0.0
        %787 = vmatpush.xpose.msra.mxu0 0.0
        %788 = vmatpush.xpose.msra.mxu0 0.0
        %789 = vmatpush.xpose.msra.mxu0 0.0
        %790 = vmatpush.xpose.msra.mxu0 0.0
        %791 = vmatpush.xpose.msra.mxu0 0.0
        %792 = vmatpush.xpose.msra.mxu0 0.0
        %793 = vmatpush.xpose.msra.mxu0 0.0
        %794 = vmatpush.xpose.msra.mxu0 %v777
        %795 = vmatmul.f32.gmra.mxu0 %v775
        %v796 = vpop.f32.mrf.mxu0
        %v797 = vadd.f32 0.0, %v796
        %798 = vdwg.mxu0
        %v799 = vsel %vm592, %v797, -inf
        %800 = vmax.xlane.f32.xlu0 %v799
        %v801 = vpop.xlane.xlu0 %800
        %v802 = vsub.f32 %v797, %v801
        %v803 = vmul.f32 %v802, 1.442695
        %v804 = vpow.pop %v803
        %v805 = vsel %vm592, %v804, 0.0
        %806 = vadd.xlane.f32.xlu0 %v805
        %v807 = vpop.xlane.xlu0 %806
        %v808 = vrcp.pop %v807
        %v809 = vmul.f32 %v804, %v808
        %810 = vrot.lane.b32.xlu0 %v560, 80
        %v811 = vpop.permute.xlu0 %810
        %v814 = vsel %vm592, %v809, 0
        %816 = vmatpush.msra.mxu0 0.0
        %817 = vmatpush.msra.mxu0 0.0
        %818 = vmatpush.msra.mxu0 0.0
        %819 = vmatpush.msra.mxu0 0.0
        %820 = vmatpush.msra.mxu0 0.0
        %821 = vmatpush.msra.mxu0 0.0
        %822 = vmatpush.msra.mxu0 0.0
        %823 = vmatpush.msra.mxu0 0.0
        %824 = vmatpush.msra.mxu0 0.0
        %825 = vmatpush.msra.mxu0 0.0
        %826 = vmatpush.msra.mxu0 0.0
        %827 = vmatpush.msra.mxu0 0.0
        %828 = vmatpush.msra.mxu0 0.0
        %829 = vmatpush.msra.mxu0 0.0
        %830 = vmatpush.msra.mxu0 0.0
        %831 = vmatpush.msra.mxu0 %v811
        %832 = vmatmul.f32.gmra.mxu0 %v814
        %v833 = vpop.f32.mrf.mxu0
        %v834 = vadd.f32 0.0, %v833
        %835 = vdwg.mxu0
        %837 = vrot.lane.b32.xlu0 %v834, 48
        %v838 = vpop.permute.xlu0 %837
        %vm840 = vcmask 523648
        %841 = vst.msk [vmem:[#allocation2] sm:$0xff] %vm840, %v838
        %v842 = vld [vmem:[#allocation2] sm:$0xff]
        %v843 = vld [vmem:[%s4] sm:$0xff]
        %v844 = vld [vmem:[%s4 + $0x8] sm:$0xff]
        %v845 = vld [vmem:[%s4 + $0x10] sm:$0xff]
        %v846 = vld [vmem:[%s4 + $0x18] sm:$0xff]
        %v847 = vld [vmem:[%s4 + $0x20] sm:$0xff]
        %v848 = vld [vmem:[%s4 + $0x28] sm:$0xff]
        %v849 = vld [vmem:[%s4 + $0x30] sm:$0xff]
        %v850 = vld [vmem:[%s4 + $0x38] sm:$0xff]
        %vm851 = vcmask 523264
        %v853 = vsel %vm851, %v842, 0
        %855 = vmatpush.msra.mxu0 0.0
        %856 = vmatpush.msra.mxu0 0.0
        %857 = vmatpush.msra.mxu0 0.0
        %858 = vmatpush.msra.mxu0 0.0
        %859 = vmatpush.msra.mxu0 0.0
        %860 = vmatpush.msra.mxu0 0.0
        %861 = vmatpush.msra.mxu0 0.0
        %862 = vmatpush.msra.mxu0 0.0
        %863 = vmatpush.msra.mxu0 %v850
        %864 = vmatpush.msra.mxu0 %v849
        %865 = vmatpush.msra.mxu0 %v848
        %866 = vmatpush.msra.mxu0 %v847
        %867 = vmatpush.msra.mxu0 %v846
        %868 = vmatpush.msra.mxu0 %v845
        %869 = vmatpush.msra.mxu0 %v844
        %870 = vmatpush.msra.mxu0 %v843
        %871 = vmatmul.f32.gmra.mxu0 %v853
        %v872 = vpop.f32.mrf.mxu0
        %v873 = vadd.f32 0.0, %v872
        %874 = vdwg.mxu0
        %v875 = vadd.f32 %v382, %v873
        %v876 = vld [vmem:[%s5] sm:$0x1]
        %v877 = vld [vmem:[%s6] sm:$0x1]
        %v878 = vsel %vm385, %v875, 0.0
        %879 = vadd.xlane.f32.xlu0 %v878
        %v880 = vpop.xlane.xlu0 %879
        %v881 = vmul.f32 %v880, %v395
        %v882 = vsub.f32 %v875, %v881
        %v883 = vmul.f32 %v882, %v882
        %v884 = vsel %vm385, %v883, 0.0
        %885 = vadd.xlane.f32.xlu0 %v884
        %v886 = vpop.xlane.xlu0 %885
        %v887 = vmul.f32 %v886, %v395
        %v888 = vadd.f32 %v887, 1e-05
        %v889 = vrsqrt.pop %v888
        %v890 = vmul.f32 %v889, %v888
        %v891 = vmul.f32 %v890, %v889
        %v892 = vmul.f32 0.5, %v891
        %v893 = vsub.f32 1.5, %v892
        %v894 = vmul.f32 %v889, %v893
        %vm895 = vweird.f32 %v888
        %vm896 = vweird.f32 %v889
        %vm897 = vmor %vm895, %vm896
        %v898 = vsel %vm897, %v889, %v894
        %v899 = vmul.f32 %v882, %v898
        %v901 = vperm.slane %v876, 0
        %v903 = vmul.f32 %v899, %v901
        %v905 = vperm.slane %v877, 0
        %v907 = vadd.f32 %v903, %v905
        %v908 = vld [vmem:[%s7] sm:$0xff]
        %v909 = vld [vmem:[%s7 + $0x8] sm:$0xff]
        %v910 = vld [vmem:[%s7 + $0x10] sm:$0xff]
        %v911 = vld [vmem:[%s7 + $0x18] sm:$0xff]
        %v912 = vld [vmem:[%s7 + $0x20] sm:$0xff]
        %v913 = vld [vmem:[%s7 + $0x28] sm:$0xff]
        %v914 = vld [vmem:[%s7 + $0x30] sm:$0xff]
        %v915 = vld [vmem:[%s7 + $0x38] sm:$0xff]
        %v916 = vld [vmem:[%s8] sm:$0x1]
        %v918 = vperm.slane %v916, 0
        %v921 = vsel %vm385, %v907, 0
        %v924 = vsel %vm385, %v908, 0
        %v927 = vsel %vm385, %v909, 0
        %v930 = vsel %vm385, %v910, 0
        %v933 = vsel %vm385, %v911, 0
        %v936 = vsel %vm385, %v912, 0
        %v939 = vsel %vm385, %v913, 0
        %v942 = vsel %vm385, %v914, 0
        %v945 = vsel %vm385, %v915, 0
        %947 = vmatpush.xpose.msra.mxu0 0.0
        %948 = vmatpush.xpose.msra.mxu0 0.0
        %949 = vmatpush.xpose.msra.mxu0 0.0
        %950 = vmatpush.xpose.msra.mxu0 0.0
        %951 = vmatpush.xpose.msra.mxu0 0.0
        %952 = vmatpush.xpose.msra.mxu0 0.0
        %953 = vmatpush.xpose.msra.mxu0 0.0
        %954 = vmatpush.xpose.msra.mxu0 0.0
        %955 = vmatpush.xpose.msra.mxu0 %v945
        %956 = vmatpush.xpose.msra.mxu0 %v942
        %957 = vmatpush.xpose.msra.mxu0 %v939
        %958 = vmatpush.xpose.msra.mxu0 %v936
        %959 = vmatpush.xpose.msra.mxu0 %v933
        %960 = vmatpush.xpose.msra.mxu0 %v930
        %961 = vmatpush.xpose.msra.mxu0 %v927
        %962 = vmatpush.xpose.msra.mxu0 %v924
        %963 = vmatmul.f32.gmra.mxu0 %v921
        %v964 = vpop.f32.mrf.mxu0
        %v965 = vadd.f32 %v918, %v964
        %966 = vdwg.mxu0
        %v967 = vmul.f32 %v965, 0.5
        %v968 = vmul.f32 %v965, 0.044715
        %v969 = vmul.f32 %v968, %v965
        %v970 = vmul.f32 %v969, %v965
        %v971 = vadd.f32 %v965, %v970
        %v972 = vmul.f32 %v971, 0.7978846
        %v973 = vtanh.pop %v972
        %v974 = vadd.f32 %v973, 1.0
        %v975 = vmul.f32 %v967, %v974
        %v976 = vld [vmem:[%s9] sm:$0xff]
        %v977 = vld [vmem:[%s9 + $0x8] sm:$0xff]
        %v978 = vld [vmem:[%s9 + $0x10] sm:$0xff]
        %v979 = vld [vmem:[%s9 + $0x18] sm:$0xff]
        %v980 = vld [vmem:[%s10] sm:$0x1]
        %v982 = vperm.slane %v980, 0
        %v985 = vsel %vm851, %v975, 0
        %v988 = vsel %vm851, %v976, 0
        %v991 = vsel %vm851, %v977, 0
        %v994 = vsel %vm851, %v978, 0
        %v997 = vsel %vm851, %v979, 0
        %999 = vmatpush.xpose.msra.mxu0 0.0
        %1000 = vmatpush.xpose.msra.mxu0 0.0
        %1001 = vmatpush.xpose.msra.mxu0 0.0
        %1002 = vmatpush.xpose.msra.mxu0 0.0
        %1003 = vmatpush.xpose.msra.mxu0 0.0
        %1004 = vmatpush.xpose.msra.mxu0 0.0
        %1005 = vmatpush.xpose.msra.mxu0 0.0
        %1006 = vmatpush.xpose.msra.mxu0 0.0
        %1007 = vmatpush.xpose.msra.mxu0 0.0
        %1008 = vmatpush.xpose.msra.mxu0 0.0
        %1009 = vmatpush.xpose.msra.mxu0 0.0
        %1010 = vmatpush.xpose.msra.mxu0 0.0
        %1011 = vmatpush.xpose.msra.mxu0 %v997
        %1012 = vmatpush.xpose.msra.mxu0 %v994
        %1013 = vmatpush.xpose.msra.mxu0 %v991
        %1014 = vmatpush.xpose.msra.mxu0 %v988
        %1015 = vmatmul.f32.gmra.mxu0 %v985
        %v1016 = vpop.f32.mrf.mxu0
        %v1017 = vadd.f32 %v982, %v1016
        %1018 = vdwg.mxu0
        %v1019 = vadd.f32 %v875, %v1017
        %1020 = vst.msk [vmem:[%s377] sm:$0xff] %vm385, %v1019
        %s1021 = sand.u32 %s269, 1
        %s1022 = scalar_lea.sflag [#allocation4], %s1021
        %s1023 = sand.u32 %s269, 1
        %s1024 = smul.addr %s1023, 8
        %s1025 = scalar_lea.vmem [#allocation3], %s1024
        // Predicated region
        $region65: #{tpu_custom_call.1} parent=63 // pred_check
          %p1026 = pneg %p279
        $region66: #{tpu_custom_call.1} parent=63 // pred_check_branch
          %1028 = sbr.rel (%p1026) target = $region68
        $region67: #{tpu_custom_call.1} parent=63 // pred_region
          %1030 = vsyncadd %s1022, 0
          %s1031 = smul.addr %s25, 8
          %s1032 = scalar_lea.hbm %s11, %s1031
          %s1034 = sshll.u32 %s1025, 4
          %s1035 = int_to_ptr.vmem [resolvable:$true] %s1034
          %s1036 = sshll.u32 %s1032, 4
          %s1037 = int_to_ptr.hbm [resolvable:$true] %s1036
          %1039 = dma.vmem_to_hbm [thread:$0]  %s1035, 128, %s1037, %s1022
        $region68: #{tpu_custom_call.1} parent=63 // pred_fallthru
          _
      $region64: #{tpu_custom_call.1} parent=5 // pred_fallthru
        _
      %p1040 = scmp.le.s32.totalorder 2, %s20
      // Predicated region
      $region69: #{tpu_custom_call.1} parent=5 // pred_check
        %p1041 = pneg %p1040
      $region70: #{tpu_custom_call.1} parent=5 // pred_check_branch
        %1043 = sbr.rel (%p1041) target = $region72
      $region71: #{tpu_custom_call.1} parent=5 // pred_region
        %s1044 = ssub.s32 %s20, 2
        // Predicated region
        $region73: #{tpu_custom_call.1} parent=71 // pred_check
          %p1045 = pneg %p285
        $region74: #{tpu_custom_call.1} parent=71 // pred_check_branch
          %1047 = sbr.rel (%p1045) target = $region76
        $region75: #{tpu_custom_call.1} parent=71 // pred_region
          %s1048 = sand.u32 %s270, 1
          %s1049 = scalar_lea.sflag [#allocation4], %s1048
          %s1050 = sand.u32 %s270, 1
          %s1051 = smul.addr %s1050, 8
          %s1052 = scalar_lea.vmem [#allocation3], %s1051
          %1054 = dma.done %s1049, 128
        $region76: #{tpu_custom_call.1} parent=71 // pred_fallthru
          _
      $region72: #{tpu_custom_call.1} parent=5 // pred_fallthru
        _
    $region6: #{tpu_custom_call.1} parent=1 // loop_footer
      %s24 = sadd.s32 1, %s20
    $region7: #{tpu_custom_call.1} parent=1 // loop_footer_branch
      %19 = sbr.rel target = $region3
    $region8: #{tpu_custom_call.1} parent=1 // loop_exit
      _
    %1055 = vsyncpa [#allocation4], 1
    %s1056 = scalar_lea.sflag [#allocation4], 1
    %1057 = vsyncpa %s1056, 1

</llo_original>
